<compile_context>
chip_gen: v6e
topology: v6e:2x2x1
jax: 0.10.0
libtpu: 0.0.40
codegen_flags: <defaults>
</compile_context>

<pallas_src>
import functools

import jax
import jax.numpy as jnp
from jax.experimental import pallas as pl
from jax.experimental.pallas import tpu as pltpu

# ---- model hyper-parameters (small, consistent with the module ctor) ----
D_MODEL = 32
NUM_HEADS = 4
D_FF = 64
HEAD_DIM = D_MODEL // NUM_HEADS
LN_EPS = 1e-5  # PyTorch nn.LayerNorm default; used for both norms

_W_COLS = 3 * D_MODEL  # 96: width of the packed weight / bias slabs


def _layer_norm(x, gamma, beta, eps=LN_EPS):
    mean = jnp.mean(x, axis=-1, keepdims=True)
    var = jnp.mean((x - mean) ** 2, axis=-1, keepdims=True)  # biased, like torch
    return (x - mean) * jax.lax.rsqrt(var + eps) * gamma + beta


def encoder_block_kernel(x_ref, w_ref, bv_ref, o_ref, *, bt, seq):
    """One grid step processes `bt` batch elements of `seq` tokens each.

    x_ref : (bt, seq, D_MODEL)
    w_ref : (4, D_MODEL, 96)   page0=wqkv, page1=wo(:, :32), page2=w1(:, :64),
                               page3=w2.T(:, :64)   (zero-padded to 96 cols)
    bv_ref: (8, 96)            row0=bqkv, row1=bo, row2=b1, row3=b2,
                               rows4..7 = ln1_g, ln1_b, ln2_g, ln2_b (zero-padded)
    """
    D = D_MODEL
    M = bt * seq
    x = x_ref[...].reshape(M, D).astype(jnp.float32)  # row-wise ops see (M, D)

    # ---- unpack parameter slabs (static prefix slices; no runtime cost) ----
    wqkv = w_ref[0]                     # (32, 96)
    wo = w_ref[1][:, :D]                # (32, 32)
    w1 = w_ref[2][:, :D_FF]             # (32, 64)
    w2t = w_ref[3][:, :D_FF]            # (32, 64) == w2.T

    bv = bv_ref[...]                    # (8, 96)
    bqkv = bv[0:1, :]                   # (1, 96)
    bo = bv[1:2, :D]
    b1 = bv[2:3, :D_FF]
    b2 = bv[3:4, :D]
    ln1_g, ln1_b = bv[4:5, :D], bv[5:6, :D]
    ln2_g, ln2_b = bv[6:7, :D], bv[7:8, :D]

    # ---------------- fused QKV projection ----------------
    qkv = jnp.dot(x, wqkv, preferred_element_type=jnp.float32) + bqkv  # (M, 96)
    scale = 1.0 / (HEAD_DIM ** 0.5)
    q = qkv[:, 0:D] * scale            # scale q once (cheaper than scaling scores)
    k = qkv[:, D:2 * D]
    v = qkv[:, 2 * D:3 * D]

    # ---------------- multi-head self-attention (mask=None path) ----------------
    # Per-head outputs are projected and accumulated directly (no concatenate,
    # no explicit transpose).  bt and NUM_HEADS are tiny -> static unroll.
    attn_rows = []
    for b in range(bt):                             # static unroll over batch tile
        rows = slice(b * seq, (b + 1) * seq)
        acc = None
        for h in range(NUM_HEADS):                  # static unroll over heads
            cs = slice(h * HEAD_DIM, (h + 1) * HEAD_DIM)
            qh, kh, vh = q[rows, cs], k[rows, cs], v[rows, cs]   # (S, Hd)
            # scores = qh @ kh.T, contraction on last dims (no .T / XLU transpose)
            scores = jax.lax.dot_general(
                qh, kh, (((1,), (1,)), ((), ())),
                preferred_element_type=jnp.float32)              # (S, S)
            scores = scores - jnp.max(scores, axis=-1, keepdims=True)
            p = jnp.exp(scores)
            inv = pl.reciprocal(jnp.sum(p, axis=-1, keepdims=True), approx=True)
            p = p * inv                                          # softmax
            head = jnp.dot(p, vh, preferred_element_type=jnp.float32)  # (S, Hd)
            proj = jnp.dot(head, wo[cs, :], preferred_element_type=jnp.float32)
            acc = proj if acc is None else acc + proj
        attn_rows.append(acc)
    attn = attn_rows[0] if bt == 1 else jnp.concatenate(attn_rows, axis=0)
    attn = attn + bo                                             # (M, D)

    # dropout1 -> identity (eval / deterministic mode)
    x1 = _layer_norm(x + attn, ln1_g, ln1_b)

    # ---------------- feed-forward: Linear -> ReLU -> (dropout) -> Linear -------
    h1 = jnp.dot(x1, w1, preferred_element_type=jnp.float32) + b1
    h1 = jnp.maximum(h1, 0.0)
    # ff = h1 @ w2 == h1 contracted with w2.T on its last dim (no transpose in-kernel)
    ff = jax.lax.dot_general(
        h1, w2t, (((1,), (1,)), ((), ())),
        preferred_element_type=jnp.float32) + b2

    # dropout2 -> identity (eval / deterministic mode)
    x2 = _layer_norm(x1 + ff, ln2_g, ln2_b)
    o_ref[...] = x2.reshape(bt, seq, D).astype(o_ref.dtype)


def _pack_params(p):
    """Pack the 16 small parameter tensors into 2 slabs (weights + biases/LN)."""
    def pad_cols(w):
        return jnp.pad(w, ((0, 0), (0, _W_COLS - w.shape[1])))

    wqkv = jnp.concatenate([p["wq"], p["wk"], p["wv"]], axis=1)          # (32, 96)
    w_slab = jnp.stack(
        [wqkv, pad_cols(p["wo"]), pad_cols(p["w1"]), pad_cols(p["w2"].T)],
        axis=0).astype(jnp.float32)                                      # (4, 32, 96)

    def pad_row(b):
        b = jnp.asarray(b, jnp.float32).reshape(1, -1)
        return jnp.pad(b, ((0, 0), (0, _W_COLS - b.shape[1])))

    b_slab = jnp.concatenate([
        jnp.concatenate([p["bq"], p["bk"], p["bv"]], axis=1),            # (1, 96)
        pad_row(p["bo"]), pad_row(p["b1"]), pad_row(p["b2"]),
        pad_row(p["ln1_g"]), pad_row(p["ln1_b"]),
        pad_row(p["ln2_g"]), pad_row(p["ln2_b"]),
    ], axis=0).astype(jnp.float32)                                       # (8, 96)
    return w_slab, b_slab


def _choose_block_batch(B, S, target_rows=256, max_heads_unrolled=64):
    """Largest batch-tile bt that (a) divides B, (b) keeps >= 2 grid steps when
    B >= 2 (v7x has 2 TensorCores/chip), (c) bounds static unroll / VMEM."""
    best = 1
    for bt in range(1, B + 1):
        if B % bt:
            continue
        if B >= 2 and B // bt < 2:
            continue
        if bt * NUM_HEADS > max_heads_unrolled:
            continue
        if bt * S > 2 * target_rows:
            continue
        best = bt
        if bt * S >= target_rows:
            break
    return best


def boring_encoder_block(x, params):
    B, S, D = x.shape
    assert D == D_MODEL
    bt = _choose_block_batch(B, S)
    w_slab, b_slab = _pack_params(params)

    kernel = functools.partial(encoder_block_kernel, bt=bt, seq=S)
    return pl.pallas_call(
        kernel,
        out_shape=jax.ShapeDtypeStruct((B, S, D), x.dtype),
        grid=(B // bt,),
        in_specs=[
            pl.BlockSpec((bt, S, D), lambda b: (b, 0, 0)),
            pl.BlockSpec(w_slab.shape, lambda b: (0, 0, 0)),   # params resident
            pl.BlockSpec(b_slab.shape, lambda b: (0, 0)),
        ],
        out_specs=pl.BlockSpec((bt, S, D), lambda b: (b, 0, 0)),
        compiler_params=pltpu.CompilerParams(dimension_semantics=("parallel",)),
    )(x, w_slab, b_slab)


# ---------------------- pure-JAX reference (for correctness check) ----------------------
def reference_encoder_block(x, p):
    x = x.astype(jnp.float32)
    q = x @ p["wq"] + p["bq"]
    k = x @ p["wk"] + p["bk"]
    v = x @ p["wv"] + p["bv"]
    B, S, D = x.shape
    qh = q.reshape(B, S, NUM_HEADS, HEAD_DIM).transpose(0, 2, 1, 3)
    kh = k.reshape(B, S, NUM_HEADS, HEAD_DIM).transpose(0, 2, 1, 3)
    vh = v.reshape(B, S, NUM_HEADS, HEAD_DIM).transpose(0, 2, 1, 3)
    scores = jnp.einsum("bhqd,bhkd->bhqk", qh, kh) / jnp.sqrt(jnp.float32(HEAD_DIM))
    pattn = jax.nn.softmax(scores, axis=-1)
    out = jnp.einsum("bhqk,bhkd->bhqd", pattn, vh).transpose(0, 2, 1, 3).reshape(B, S, D)
    attn = out @ p["wo"] + p["bo"]
    x1 = _layer_norm(x + attn, p["ln1_g"], p["ln1_b"])
    ff = jnp.maximum(x1 @ p["w1"] + p["b1"], 0.0) @ p["w2"] + p["b2"]
    return _layer_norm(x1 + ff, p["ln2_g"], p["ln2_b"])


def make_params(key):
    keys = jax.random.split(key, 8)
    s = 0.02
    return {
        "wq": s * jax.random.normal(keys[0], (D_MODEL, D_MODEL), jnp.float32),
        "wk": s * jax.random.normal(keys[1], (D_MODEL, D_MODEL), jnp.float32),
        "wv": s * jax.random.normal(keys[2], (D_MODEL, D_MODEL), jnp.float32),
        "wo": s * jax.random.normal(keys[3], (D_MODEL, D_MODEL), jnp.float32),
        "bq": s * jax.random.normal(keys[4], (1, D_MODEL), jnp.float32),
        "bk": jnp.zeros((1, D_MODEL), jnp.float32),
        "bv": jnp.zeros((1, D_MODEL), jnp.float32),
        "bo": jnp.zeros((1, D_MODEL), jnp.float32),
        "ln1_g": jnp.ones((1, D_MODEL), jnp.float32),
        "ln1_b": jnp.zeros((1, D_MODEL), jnp.float32),
        "w1": s * jax.random.normal(keys[5], (D_MODEL, D_FF), jnp.float32),
        "b1": s * jax.random.normal(keys[6], (1, D_FF), jnp.float32),
        "w2": s * jax.random.normal(keys[7], (D_FF, D_MODEL), jnp.float32),
        "b2": jnp.zeros((1, D_MODEL), jnp.float32),
        "ln2_g": jnp.ones((1, D_MODEL), jnp.float32),
        "ln2_b": jnp.zeros((1, D_MODEL), jnp.float32),
    }


if __name__ == "__main__":
    key = jax.random.PRNGKey(0)
    kx, kp = jax.random.split(key)
    B, S = 2, 8
    x = jax.random.normal(kx, (B, S, D_MODEL), jnp.float32)
    params = make_params(kp)

    out = boring_encoder_block(x, params)
    out = jax.block_until_ready(out)

    ref = reference_encoder_block(x, params)
    assert out.shape == (B, S, D_MODEL)
    # slightly looser than 1e-4 because the softmax denominator uses the EUP
    # approximate reciprocal (pl.reciprocal(..., approx=True))
    assert jnp.allclose(out, ref, atol=2e-3, rtol=2e-3), "mismatch vs reference"

    print("KERNEL_OK")
</pallas_src>

<mosaic_0001>
module attributes {stable_mosaic.version = 11 : i64} {
  func.func @encoder_block_kernel(%arg0: i32, %arg1: memref<1x8x32xf32, #tpu.memory_space<vmem>>, %arg2: memref<4x32x96xf32, #tpu.memory_space<vmem>>, %arg3: memref<8x96xf32, #tpu.memory_space<vmem>>, %arg4: memref<1x8x32xf32, #tpu.memory_space<vmem>>) attributes {dimension_semantics = [#tpu.dimension_semantics<parallel>], iteration_bounds = array<i64: 2>, scalar_prefetch = 0 : i64, scratch_operands = 0 : i64, tpu.core_type = #tpu.core_type<tc>, window_params = [{transform_indices = @transform_0, window_bounds = array<i64: 1, 8, 32>}, {pipeline_mode = #tpu.pipeline_mode<synchronous>, transform_indices = @transform_1, window_bounds = array<i64: 4, 32, 96>}, {pipeline_mode = #tpu.pipeline_mode<synchronous>, transform_indices = @transform_2, window_bounds = array<i64: 8, 96>}, {transform_indices = @transform_3, window_bounds = array<i64: 1, 8, 32>}]} {
    %c0 = arith.constant 0 : index
    %c0_0 = arith.constant 0 : index
    %c0_1 = arith.constant 0 : index
    %0 = vector.load %arg1[%c0, %c0_0, %c0_1] : memref<1x8x32xf32, #tpu.memory_space<vmem>>, vector<1x8x32xf32>
    %1 = vector.shape_cast %0 : vector<1x8x32xf32> to vector<8x32xf32>
    %c0_2 = arith.constant 0 : index
    %c0_3 = arith.constant 0 : index
    %c0_4 = arith.constant 0 : index
    %2 = vector.load %arg2[%c0_2, %c0_3, %c0_4] : memref<4x32x96xf32, #tpu.memory_space<vmem>>, vector<1x32x96xf32>
    %3 = vector.shape_cast %2 : vector<1x32x96xf32> to vector<32x96xf32>
    %c1 = arith.constant 1 : index
    %c0_5 = arith.constant 0 : index
    %c0_6 = arith.constant 0 : index
    %4 = vector.load %arg2[%c1, %c0_5, %c0_6] : memref<4x32x96xf32, #tpu.memory_space<vmem>>, vector<1x32x96xf32>
    %5 = vector.shape_cast %4 : vector<1x32x96xf32> to vector<32x96xf32>
    %6 = vector.extract_strided_slice %5 {offsets = [0, 0], sizes = [32, 32], strides = [1, 1]} : vector<32x96xf32> to vector<32x32xf32>
    %c2 = arith.constant 2 : index
    %c0_7 = arith.constant 0 : index
    %c0_8 = arith.constant 0 : index
    %7 = vector.load %arg2[%c2, %c0_7, %c0_8] : memref<4x32x96xf32, #tpu.memory_space<vmem>>, vector<1x32x96xf32>
    %8 = vector.shape_cast %7 : vector<1x32x96xf32> to vector<32x96xf32>
    %9 = vector.extract_strided_slice %8 {offsets = [0, 0], sizes = [32, 64], strides = [1, 1]} : vector<32x96xf32> to vector<32x64xf32>
    %c3 = arith.constant 3 : index
    %c0_9 = arith.constant 0 : index
    %c0_10 = arith.constant 0 : index
    %10 = vector.load %arg2[%c3, %c0_9, %c0_10] : memref<4x32x96xf32, #tpu.memory_space<vmem>>, vector<1x32x96xf32>
    %11 = vector.shape_cast %10 : vector<1x32x96xf32> to vector<32x96xf32>
    %12 = vector.extract_strided_slice %11 {offsets = [0, 0], sizes = [32, 64], strides = [1, 1]} : vector<32x96xf32> to vector<32x64xf32>
    %c0_11 = arith.constant 0 : index
    %c0_12 = arith.constant 0 : index
    %13 = vector.load %arg3[%c0_11, %c0_12] : memref<8x96xf32, #tpu.memory_space<vmem>>, vector<8x96xf32>
    %14 = vector.extract_strided_slice %13 {offsets = [0, 0], sizes = [1, 96], strides = [1, 1]} : vector<8x96xf32> to vector<1x96xf32>
    %15 = vector.extract_strided_slice %13 {offsets = [1, 0], sizes = [1, 32], strides = [1, 1]} : vector<8x96xf32> to vector<1x32xf32>
    %16 = vector.extract_strided_slice %13 {offsets = [2, 0], sizes = [1, 64], strides = [1, 1]} : vector<8x96xf32> to vector<1x64xf32>
    %17 = vector.extract_strided_slice %13 {offsets = [3, 0], sizes = [1, 32], strides = [1, 1]} : vector<8x96xf32> to vector<1x32xf32>
    %18 = vector.extract_strided_slice %13 {offsets = [4, 0], sizes = [1, 32], strides = [1, 1]} : vector<8x96xf32> to vector<1x32xf32>
    %19 = vector.extract_strided_slice %13 {offsets = [5, 0], sizes = [1, 32], strides = [1, 1]} : vector<8x96xf32> to vector<1x32xf32>
    %20 = vector.extract_strided_slice %13 {offsets = [6, 0], sizes = [1, 32], strides = [1, 1]} : vector<8x96xf32> to vector<1x32xf32>
    %21 = vector.extract_strided_slice %13 {offsets = [7, 0], sizes = [1, 32], strides = [1, 1]} : vector<8x96xf32> to vector<1x32xf32>
    %cst = arith.constant dense<0.000000e+00> : vector<8x96xf32>
    %22 = tpu.matmul %1, %3, %cst {dimension_numbers = #tpu.dot_dimension_numbers<[1], [0], [0], [1], [0, 0, 1, 1], [], []>} : vector<8x32xf32>, vector<32x96xf32>, vector<8x96xf32> -> vector<8x96xf32>
    %23 = vector.broadcast %14 : vector<1x96xf32> to vector<8x96xf32>
    %24 = arith.addf %22, %23 : vector<8x96xf32>
    %25 = vector.extract_strided_slice %24 {offsets = [0, 0], sizes = [8, 32], strides = [1, 1]} : vector<8x96xf32> to vector<8x32xf32>
    %cst_13 = arith.constant 0.353553385 : f32
    %26 = vector.broadcast %cst_13 : f32 to vector<8x32xf32>
    %27 = arith.mulf %25, %26 : vector<8x32xf32>
    %28 = vector.extract_strided_slice %24 {offsets = [0, 32], sizes = [8, 32], strides = [1, 1]} : vector<8x96xf32> to vector<8x32xf32>
    %29 = vector.extract_strided_slice %24 {offsets = [0, 64], sizes = [8, 32], strides = [1, 1]} : vector<8x96xf32> to vector<8x32xf32>
    %30 = vector.extract_strided_slice %27 {offsets = [0, 0], sizes = [8, 8], strides = [1, 1]} : vector<8x32xf32> to vector<8x8xf32>
    %31 = vector.extract_strided_slice %28 {offsets = [0, 0], sizes = [8, 8], strides = [1, 1]} : vector<8x32xf32> to vector<8x8xf32>
    %32 = vector.extract_strided_slice %29 {offsets = [0, 0], sizes = [8, 8], strides = [1, 1]} : vector<8x32xf32> to vector<8x8xf32>
    %cst_14 = arith.constant dense<0.000000e+00> : vector<8x8xf32>
    %33 = tpu.matmul %30, %31, %cst_14 {dimension_numbers = #tpu.dot_dimension_numbers<[1], [1], [0], [0], [0, 0, 1, 0], [], []>} : vector<8x8xf32>, vector<8x8xf32>, vector<8x8xf32> -> vector<8x8xf32>
    %cst_15 = arith.constant dense<0xFF800000> : vector<8xf32>
    %34 = vector.multi_reduction <maximumf>, %33, %cst_15 [1] : vector<8x8xf32> to vector<8xf32>
    %35 = vector.shape_cast %34 : vector<8xf32> to vector<8x1xf32>
    %36 = vector.broadcast %35 : vector<8x1xf32> to vector<8x8xf32>
    %37 = arith.subf %33, %36 : vector<8x8xf32>
    %38 = math.exp %37 : vector<8x8xf32>
    %cst_16 = arith.constant dense<0.000000e+00> : vector<8xf32>
    %39 = vector.multi_reduction <add>, %38, %cst_16 [1] : vector<8x8xf32> to vector<8xf32>
    %40 = vector.shape_cast %39 : vector<8xf32> to vector<8x1xf32>
    %41 = tpu.reciprocal %40 {approx = true} : vector<8x1xf32> -> vector<8x1xf32>
    %42 = vector.broadcast %41 : vector<8x1xf32> to vector<8x8xf32>
    %43 = arith.mulf %38, %42 : vector<8x8xf32>
    %cst_17 = arith.constant dense<0.000000e+00> : vector<8x8xf32>
    %44 = tpu.matmul %43, %32, %cst_17 {dimension_numbers = #tpu.dot_dimension_numbers<[1], [0], [0], [1], [0, 0, 1, 1], [], []>} : vector<8x8xf32>, vector<8x8xf32>, vector<8x8xf32> -> vector<8x8xf32>
    %45 = vector.extract_strided_slice %6 {offsets = [0, 0], sizes = [8, 32], strides = [1, 1]} : vector<32x32xf32> to vector<8x32xf32>
    %cst_18 = arith.constant dense<0.000000e+00> : vector<8x32xf32>
    %46 = tpu.matmul %44, %45, %cst_18 {dimension_numbers = #tpu.dot_dimension_numbers<[1], [0], [0], [1], [0, 0, 1, 1], [], []>} : vector<8x8xf32>, vector<8x32xf32>, vector<8x32xf32> -> vector<8x32xf32>
    %47 = vector.extract_strided_slice %27 {offsets = [0, 8], sizes = [8, 8], strides = [1, 1]} : vector<8x32xf32> to vector<8x8xf32>
    %48 = vector.extract_strided_slice %28 {offsets = [0, 8], sizes = [8, 8], strides = [1, 1]} : vector<8x32xf32> to vector<8x8xf32>
    %49 = vector.extract_strided_slice %29 {offsets = [0, 8], sizes = [8, 8], strides = [1, 1]} : vector<8x32xf32> to vector<8x8xf32>
    %cst_19 = arith.constant dense<0.000000e+00> : vector<8x8xf32>
    %50 = tpu.matmul %47, %48, %cst_19 {dimension_numbers = #tpu.dot_dimension_numbers<[1], [1], [0], [0], [0, 0, 1, 0], [], []>} : vector<8x8xf32>, vector<8x8xf32>, vector<8x8xf32> -> vector<8x8xf32>
    %cst_20 = arith.constant dense<0xFF800000> : vector<8xf32>
    %51 = vector.multi_reduction <maximumf>, %50, %cst_20 [1] : vector<8x8xf32> to vector<8xf32>
    %52 = vector.shape_cast %51 : vector<8xf32> to vector<8x1xf32>
    %53 = vector.broadcast %52 : vector<8x1xf32> to vector<8x8xf32>
    %54 = arith.subf %50, %53 : vector<8x8xf32>
    %55 = math.exp %54 : vector<8x8xf32>
    %cst_21 = arith.constant dense<0.000000e+00> : vector<8xf32>
    %56 = vector.multi_reduction <add>, %55, %cst_21 [1] : vector<8x8xf32> to vector<8xf32>
    %57 = vector.shape_cast %56 : vector<8xf32> to vector<8x1xf32>
    %58 = tpu.reciprocal %57 {approx = true} : vector<8x1xf32> -> vector<8x1xf32>
    %59 = vector.broadcast %58 : vector<8x1xf32> to vector<8x8xf32>
    %60 = arith.mulf %55, %59 : vector<8x8xf32>
    %cst_22 = arith.constant dense<0.000000e+00> : vector<8x8xf32>
    %61 = tpu.matmul %60, %49, %cst_22 {dimension_numbers = #tpu.dot_dimension_numbers<[1], [0], [0], [1], [0, 0, 1, 1], [], []>} : vector<8x8xf32>, vector<8x8xf32>, vector<8x8xf32> -> vector<8x8xf32>
    %62 = vector.extract_strided_slice %6 {offsets = [8, 0], sizes = [8, 32], strides = [1, 1]} : vector<32x32xf32> to vector<8x32xf32>
    %cst_23 = arith.constant dense<0.000000e+00> : vector<8x32xf32>
    %63 = tpu.matmul %61, %62, %cst_23 {dimension_numbers = #tpu.dot_dimension_numbers<[1], [0], [0], [1], [0, 0, 1, 1], [], []>} : vector<8x8xf32>, vector<8x32xf32>, vector<8x32xf32> -> vector<8x32xf32>
    %64 = arith.addf %46, %63 : vector<8x32xf32>
    %65 = vector.extract_strided_slice %27 {offsets = [0, 16], sizes = [8, 8], strides = [1, 1]} : vector<8x32xf32> to vector<8x8xf32>
    %66 = vector.extract_strided_slice %28 {offsets = [0, 16], sizes = [8, 8], strides = [1, 1]} : vector<8x32xf32> to vector<8x8xf32>
    %67 = vector.extract_strided_slice %29 {offsets = [0, 16], sizes = [8, 8], strides = [1, 1]} : vector<8x32xf32> to vector<8x8xf32>
    %cst_24 = arith.constant dense<0.000000e+00> : vector<8x8xf32>
    %68 = tpu.matmul %65, %66, %cst_24 {dimension_numbers = #tpu.dot_dimension_numbers<[1], [1], [0], [0], [0, 0, 1, 0], [], []>} : vector<8x8xf32>, vector<8x8xf32>, vector<8x8xf32> -> vector<8x8xf32>
    %cst_25 = arith.constant dense<0xFF800000> : vector<8xf32>
    %69 = vector.multi_reduction <maximumf>, %68, %cst_25 [1] : vector<8x8xf32> to vector<8xf32>
    %70 = vector.shape_cast %69 : vector<8xf32> to vector<8x1xf32>
    %71 = vector.broadcast %70 : vector<8x1xf32> to vector<8x8xf32>
    %72 = arith.subf %68, %71 : vector<8x8xf32>
    %73 = math.exp %72 : vector<8x8xf32>
    %cst_26 = arith.constant dense<0.000000e+00> : vector<8xf32>
    %74 = vector.multi_reduction <add>, %73, %cst_26 [1] : vector<8x8xf32> to vector<8xf32>
    %75 = vector.shape_cast %74 : vector<8xf32> to vector<8x1xf32>
    %76 = tpu.reciprocal %75 {approx = true} : vector<8x1xf32> -> vector<8x1xf32>
    %77 = vector.broadcast %76 : vector<8x1xf32> to vector<8x8xf32>
    %78 = arith.mulf %73, %77 : vector<8x8xf32>
    %cst_27 = arith.constant dense<0.000000e+00> : vector<8x8xf32>
    %79 = tpu.matmul %78, %67, %cst_27 {dimension_numbers = #tpu.dot_dimension_numbers<[1], [0], [0], [1], [0, 0, 1, 1], [], []>} : vector<8x8xf32>, vector<8x8xf32>, vector<8x8xf32> -> vector<8x8xf32>
    %80 = vector.extract_strided_slice %6 {offsets = [16, 0], sizes = [8, 32], strides = [1, 1]} : vector<32x32xf32> to vector<8x32xf32>
    %cst_28 = arith.constant dense<0.000000e+00> : vector<8x32xf32>
    %81 = tpu.matmul %79, %80, %cst_28 {dimension_numbers = #tpu.dot_dimension_numbers<[1], [0], [0], [1], [0, 0, 1, 1], [], []>} : vector<8x8xf32>, vector<8x32xf32>, vector<8x32xf32> -> vector<8x32xf32>
    %82 = arith.addf %64, %81 : vector<8x32xf32>
    %83 = vector.extract_strided_slice %27 {offsets = [0, 24], sizes = [8, 8], strides = [1, 1]} : vector<8x32xf32> to vector<8x8xf32>
    %84 = vector.extract_strided_slice %28 {offsets = [0, 24], sizes = [8, 8], strides = [1, 1]} : vector<8x32xf32> to vector<8x8xf32>
    %85 = vector.extract_strided_slice %29 {offsets = [0, 24], sizes = [8, 8], strides = [1, 1]} : vector<8x32xf32> to vector<8x8xf32>
    %cst_29 = arith.constant dense<0.000000e+00> : vector<8x8xf32>
    %86 = tpu.matmul %83, %84, %cst_29 {dimension_numbers = #tpu.dot_dimension_numbers<[1], [1], [0], [0], [0, 0, 1, 0], [], []>} : vector<8x8xf32>, vector<8x8xf32>, vector<8x8xf32> -> vector<8x8xf32>
    %cst_30 = arith.constant dense<0xFF800000> : vector<8xf32>
    %87 = vector.multi_reduction <maximumf>, %86, %cst_30 [1] : vector<8x8xf32> to vector<8xf32>
    %88 = vector.shape_cast %87 : vector<8xf32> to vector<8x1xf32>
    %89 = vector.broadcast %88 : vector<8x1xf32> to vector<8x8xf32>
    %90 = arith.subf %86, %89 : vector<8x8xf32>
    %91 = math.exp %90 : vector<8x8xf32>
    %cst_31 = arith.constant dense<0.000000e+00> : vector<8xf32>
    %92 = vector.multi_reduction <add>, %91, %cst_31 [1] : vector<8x8xf32> to vector<8xf32>
    %93 = vector.shape_cast %92 : vector<8xf32> to vector<8x1xf32>
    %94 = tpu.reciprocal %93 {approx = true} : vector<8x1xf32> -> vector<8x1xf32>
    %95 = vector.broadcast %94 : vector<8x1xf32> to vector<8x8xf32>
    %96 = arith.mulf %91, %95 : vector<8x8xf32>
    %cst_32 = arith.constant dense<0.000000e+00> : vector<8x8xf32>
    %97 = tpu.matmul %96, %85, %cst_32 {dimension_numbers = #tpu.dot_dimension_numbers<[1], [0], [0], [1], [0, 0, 1, 1], [], []>} : vector<8x8xf32>, vector<8x8xf32>, vector<8x8xf32> -> vector<8x8xf32>
    %98 = vector.extract_strided_slice %6 {offsets = [24, 0], sizes = [8, 32], strides = [1, 1]} : vector<32x32xf32> to vector<8x32xf32>
    %cst_33 = arith.constant dense<0.000000e+00> : vector<8x32xf32>
    %99 = tpu.matmul %97, %98, %cst_33 {dimension_numbers = #tpu.dot_dimension_numbers<[1], [0], [0], [1], [0, 0, 1, 1], [], []>} : vector<8x8xf32>, vector<8x32xf32>, vector<8x32xf32> -> vector<8x32xf32>
    %100 = arith.addf %82, %99 : vector<8x32xf32>
    %101 = vector.broadcast %15 : vector<1x32xf32> to vector<8x32xf32>
    %102 = arith.addf %100, %101 : vector<8x32xf32>
    %103 = arith.addf %1, %102 : vector<8x32xf32>
    %cst_34 = arith.constant dense<0.000000e+00> : vector<8xf32>
    %104 = vector.multi_reduction <add>, %103, %cst_34 [1] : vector<8x32xf32> to vector<8xf32>
    %105 = vector.shape_cast %104 : vector<8xf32> to vector<8x1xf32>
    %cst_35 = arith.constant 3.200000e+01 : f32
    %106 = vector.broadcast %cst_35 : f32 to vector<8x1xf32>
    %107 = arith.divf %105, %106 : vector<8x1xf32>
    %108 = vector.broadcast %107 : vector<8x1xf32> to vector<8x32xf32>
    %109 = arith.subf %103, %108 : vector<8x32xf32>
    %110 = arith.mulf %109, %109 : vector<8x32xf32>
    %cst_36 = arith.constant dense<0.000000e+00> : vector<8xf32>
    %111 = vector.multi_reduction <add>, %110, %cst_36 [1] : vector<8x32xf32> to vector<8xf32>
    %112 = vector.shape_cast %111 : vector<8xf32> to vector<8x1xf32>
    %cst_37 = arith.constant 3.200000e+01 : f32
    %113 = vector.broadcast %cst_37 : f32 to vector<8x1xf32>
    %114 = arith.divf %112, %113 : vector<8x1xf32>
    %115 = vector.broadcast %107 : vector<8x1xf32> to vector<8x32xf32>
    %116 = arith.subf %103, %115 : vector<8x32xf32>
    %cst_38 = arith.constant 9.99999974E-6 : f32
    %117 = vector.broadcast %cst_38 : f32 to vector<8x1xf32>
    %118 = arith.addf %114, %117 : vector<8x1xf32>
    %119 = math.rsqrt %118 : vector<8x1xf32>
    %120 = vector.broadcast %119 : vector<8x1xf32> to vector<8x32xf32>
    %121 = arith.mulf %116, %120 : vector<8x32xf32>
    %122 = vector.broadcast %18 : vector<1x32xf32> to vector<8x32xf32>
    %123 = arith.mulf %121, %122 : vector<8x32xf32>
    %124 = vector.broadcast %19 : vector<1x32xf32> to vector<8x32xf32>
    %125 = arith.addf %123, %124 : vector<8x32xf32>
    %cst_39 = arith.constant dense<0.000000e+00> : vector<8x64xf32>
    %126 = tpu.matmul %125, %9, %cst_39 {dimension_numbers = #tpu.dot_dimension_numbers<[1], [0], [0], [1], [0, 0, 1, 1], [], []>} : vector<8x32xf32>, vector<32x64xf32>, vector<8x64xf32> -> vector<8x64xf32>
    %127 = vector.broadcast %16 : vector<1x64xf32> to vector<8x64xf32>
    %128 = arith.addf %126, %127 : vector<8x64xf32>
    %cst_40 = arith.constant 0.000000e+00 : f32
    %129 = vector.broadcast %cst_40 : f32 to vector<8x64xf32>
    %130 = arith.maximumf %128, %129 : vector<8x64xf32>
    %cst_41 = arith.constant dense<0.000000e+00> : vector<8x32xf32>
    %131 = tpu.matmul %130, %12, %cst_41 {dimension_numbers = #tpu.dot_dimension_numbers<[1], [1], [0], [0], [0, 0, 1, 0], [], []>} : vector<8x64xf32>, vector<32x64xf32>, vector<8x32xf32> -> vector<8x32xf32>
    %132 = vector.broadcast %17 : vector<1x32xf32> to vector<8x32xf32>
    %133 = arith.addf %131, %132 : vector<8x32xf32>
    %134 = arith.addf %125, %133 : vector<8x32xf32>
    %cst_42 = arith.constant dense<0.000000e+00> : vector<8xf32>
    %135 = vector.multi_reduction <add>, %134, %cst_42 [1] : vector<8x32xf32> to vector<8xf32>
    %136 = vector.shape_cast %135 : vector<8xf32> to vector<8x1xf32>
    %cst_43 = arith.constant 3.200000e+01 : f32
    %137 = vector.broadcast %cst_43 : f32 to vector<8x1xf32>
    %138 = arith.divf %136, %137 : vector<8x1xf32>
    %139 = vector.broadcast %138 : vector<8x1xf32> to vector<8x32xf32>
    %140 = arith.subf %134, %139 : vector<8x32xf32>
    %141 = arith.mulf %140, %140 : vector<8x32xf32>
    %cst_44 = arith.constant dense<0.000000e+00> : vector<8xf32>
    %142 = vector.multi_reduction <add>, %141, %cst_44 [1] : vector<8x32xf32> to vector<8xf32>
    %143 = vector.shape_cast %142 : vector<8xf32> to vector<8x1xf32>
    %cst_45 = arith.constant 3.200000e+01 : f32
    %144 = vector.broadcast %cst_45 : f32 to vector<8x1xf32>
    %145 = arith.divf %143, %144 : vector<8x1xf32>
    %146 = vector.broadcast %138 : vector<8x1xf32> to vector<8x32xf32>
    %147 = arith.subf %134, %146 : vector<8x32xf32>
    %cst_46 = arith.constant 9.99999974E-6 : f32
    %148 = vector.broadcast %cst_46 : f32 to vector<8x1xf32>
    %149 = arith.addf %145, %148 : vector<8x1xf32>
    %150 = math.rsqrt %149 : vector<8x1xf32>
    %151 = vector.broadcast %150 : vector<8x1xf32> to vector<8x32xf32>
    %152 = arith.mulf %147, %151 : vector<8x32xf32>
    %153 = vector.broadcast %20 : vector<1x32xf32> to vector<8x32xf32>
    %154 = arith.mulf %152, %153 : vector<8x32xf32>
    %155 = vector.broadcast %21 : vector<1x32xf32> to vector<8x32xf32>
    %156 = arith.addf %154, %155 : vector<8x32xf32>
    %157 = vector.shape_cast %156 : vector<8x32xf32> to vector<1x8x32xf32>
    %c0_47 = arith.constant 0 : index
    %c0_48 = arith.constant 0 : index
    %c0_49 = arith.constant 0 : index
    %158 = vector.load %arg4[%c0_47, %c0_48, %c0_49] : memref<1x8x32xf32, #tpu.memory_space<vmem>>, vector<1x8x32xf32>
    tpu.vector_store %arg4[%c0_47, %c0_48, %c0_49], %157 {strides = array<i32>} : memref<1x8x32xf32, #tpu.memory_space<vmem>>, vector<1x8x32xf32>,
    return
  }
  func.func @transform_0(%arg0: i32) -> (i32, i32, i32) {
    %c0_i32 = arith.constant 0 : i32
    %c0_i32_0 = arith.constant 0 : i32
    %c0_i32_1 = arith.constant 0 : i32
    return %arg0, %c0_i32, %c0_i32_0 : i32, i32, i32
  }
  func.func @transform_1(%arg0: i32) -> (i32, i32, i32) {
    %c0_i32 = arith.constant 0 : i32
    %c0_i32_0 = arith.constant 0 : i32
    %c0_i32_1 = arith.constant 0 : i32
    %c0_i32_2 = arith.constant 0 : i32
    return %c0_i32, %c0_i32_0, %c0_i32_1 : i32, i32, i32
  }
  func.func @transform_2(%arg0: i32) -> (i32, i32) {
    %c0_i32 = arith.constant 0 : i32
    %c0_i32_0 = arith.constant 0 : i32
    %c0_i32_1 = arith.constant 0 : i32
    return %c0_i32, %c0_i32_0 : i32, i32
  }
  func.func @transform_3(%arg0: i32) -> (i32, i32, i32) {
    %c0_i32 = arith.constant 0 : i32
    %c0_i32_0 = arith.constant 0 : i32
    %c0_i32_1 = arith.constant 0 : i32
    return %arg0, %c0_i32, %c0_i32_0 : i32, i32, i32
  }
}

</mosaic_0001>

<llo_original>
// kernel: tpu_custom_call.1
$region0: #{tpu_custom_call.1}
  #allocation0 [shape = 'u32[]', space=smem, size = 0x4, offset = 0x4, fixed_abs, tag = 'smem constant byte address 0x4 - core index']
  #allocation1 [shape = 'u32[144,128]{1,0:T(1,128)}', space=vmem, size = 0x12000, scoped, tag = 'internal scratch']
  %s0 = inlined_call_operand.hbm [shape: f32[2,8,32], index: 0, kind: input, shape index: {}]
  %s1 = inlined_call_operand.hbm [shape: f32[4,32,96], index: 1, kind: input, shape index: {}]
  %s2 = inlined_call_operand.hbm [shape: f32[8,96], index: 2, kind: input, shape index: {}]
  %s3 = inlined_call_operand.hbm [shape: f32[2,8,32], index: 3, kind: output, shape index: {}]
  %s4 = sld [smem:[#allocation0]]
  $region57: #{tpu_custom_call.1} parent=0
    _
  %s6 = ssub.s32 1, %s4
  %s7 = scalar_select 0, %s6, %s4
  $region1: #{tpu_custom_call.1} parent=0
    #allocation2 [shape = 'u8[8192]{0}', space=vmem, size = 0x2000, scoped, tag = 'input window, operand 0']
    #allocation3 [shape = 's32[2]{0}', space=sflag, size = 0x8, scoped, tag = 'scoped memory for tpu_custom_call.1']
    #allocation4 [shape = 's32[2]{0}', space=sflag, size = 0x8, scoped, tag = 'scoped memory for tpu_custom_call.1']
    #allocation5 [shape = 'u8[65536]{0}', space=vmem, size = 0x10000, scoped, tag = 'input window, operand 1, single buffered']
    #allocation6 [shape = 's32[1]{0}', space=sflag, size = 0x4, scoped, tag = 'scoped memory for tpu_custom_call.1']
    #allocation7 [shape = 'u8[4096]{0}', space=vmem, size = 0x1000, scoped, tag = 'input window, operand 2, single buffered']
    #allocation8 [shape = 'u8[8192]{0}', space=vmem, size = 0x2000, scoped, tag = 'output window, operand 0']
    %8 = vsyncpa [#allocation3], 0
    %s9 = scalar_lea.sflag [#allocation3], 1
    %10 = vsyncpa %s9, 0
    %11 = vsyncpa [#allocation6], 0
    %12 = vsyncpa [#allocation4], 0
    %s13 = scalar_lea.sflag [#allocation4], 1
    %14 = vsyncpa %s13, 0
    loop: start=0, step=1, limit=4
    $region2: #{tpu_custom_call.1} parent=1 // loop_pre_header
      _
    $region3: #{tpu_custom_call.1} parent=1 // loop_header
      %s16 = sphi 0, %s20
      %p17 = scmp.ge.s32.totalorder %s16, 4
      %s26 = sphi 0, %s28
      %s29 = sphi 0, %s26
      %s30 = sphi 0, %s29
      %s46 = sphi 0, %s30
      %s50 = sphi 0, %s50
      %s52 = sphi 0, %s50
      %s53 = sphi 0, %s52
      %s67 = sphi 0, %s53
      %s71 = sphi 0, %s71
      %s73 = sphi 0, %s71
      %s74 = sphi 0, %s73
      %s88 = sphi 0, %s74
      %s94 = sphi 0, %s96
      %s97 = sphi 0, %s94
      %s98 = sphi 0, %s97
      %s114 = sphi 0, %s98
    $region4: #{tpu_custom_call.1} parent=1 // loop_header_branch
      %19 = sbr.rel (%p17) target = $region8
    $region5: #{tpu_custom_call.1} parent=1 // loop_body
      %s21 = ssub.s32 %s16, 1
      %s22 = ssub.s32 %s16, 2
      %s23 = sadd.s32 %s16, 1
      %s24 = ssub.s32 %s16, %s23
      %p25 = scmp.eq.s32.totalorder %s24, 0
      %s27 = sadd.s32 %s26, 1
      %s28 = scalar_select %p25, %s26, %s27
      %p31 = pneg %p25
      %p32 = scmp.eq.s32.totalorder %s16, 1
      %p33 = por %p31, %p32
      %p34 = scmp.ne.s32.totalorder %s26, %s29
      %p35 = scmp.eq.s32.totalorder %s16, 0
      %p36 = por %p34, %p35
      %p37 = scmp.ne.s32.totalorder %s26, %s29
      %p38 = scmp.eq.s32.totalorder %s21, 1
      %p39 = por %p37, %p38
      %p40 = scmp.ne.s32.totalorder %s29, %s30
      %p41 = scmp.eq.s32.totalorder %s21, 0
      %p42 = por %p40, %p41
      %p43 = scmp.ne.s32.totalorder %s29, %s30
      %p44 = scmp.eq.s32.totalorder %s22, 1
      %p45 = por %p43, %p44
      %p47 = scmp.ne.s32.totalorder %s30, %s46
      %p48 = scmp.eq.s32.totalorder %s22, 0
      %p49 = por %p47, %p48
      %s51 = sadd.s32 %s50, 1
      %p54 = scmp.eq.s32.totalorder %s16, 1
      %p55 = scmp.ne.s32.totalorder %s50, %s52
      %p56 = scmp.eq.s32.totalorder %s16, 0
      %p57 = por %p55, %p56
      %p58 = scmp.ne.s32.totalorder %s50, %s52
      %p59 = scmp.eq.s32.totalorder %s21, 1
      %p60 = por %p58, %p59
      %p61 = scmp.ne.s32.totalorder %s52, %s53
      %p62 = scmp.eq.s32.totalorder %s21, 0
      %p63 = por %p61, %p62
      %p64 = scmp.ne.s32.totalorder %s52, %s53
      %p65 = scmp.eq.s32.totalorder %s22, 1
      %p66 = por %p64, %p65
      %p68 = scmp.ne.s32.totalorder %s53, %s67
      %p69 = scmp.eq.s32.totalorder %s22, 0
      %p70 = por %p68, %p69
      %s72 = sadd.s32 %s71, 1
      %p75 = scmp.eq.s32.totalorder %s16, 1
      %p76 = scmp.ne.s32.totalorder %s71, %s73
      %p77 = scmp.eq.s32.totalorder %s16, 0
      %p78 = por %p76, %p77
      %p79 = scmp.ne.s32.totalorder %s71, %s73
      %p80 = scmp.eq.s32.totalorder %s21, 1
      %p81 = por %p79, %p80
      %p82 = scmp.ne.s32.totalorder %s73, %s74
      %p83 = scmp.eq.s32.totalorder %s21, 0
      %p84 = por %p82, %p83
      %p85 = scmp.ne.s32.totalorder %s73, %s74
      %p86 = scmp.eq.s32.totalorder %s22, 1
      %p87 = por %p85, %p86
      %p89 = scmp.ne.s32.totalorder %s74, %s88
      %p90 = scmp.eq.s32.totalorder %s22, 0
      %p91 = por %p89, %p90
      %s92 = ssub.s32 %s16, %s23
      %p93 = scmp.eq.s32.totalorder %s92, 0
      %s95 = sadd.s32 %s94, 1
      %s96 = scalar_select %p93, %s94, %s95
      %p99 = pneg %p93
      %p100 = scmp.eq.s32.totalorder %s16, 1
      %p101 = por %p99, %p100
      %p102 = scmp.ne.s32.totalorder %s94, %s97
      %p103 = scmp.eq.s32.totalorder %s16, 0
      %p104 = por %p102, %p103
      %p105 = scmp.ne.s32.totalorder %s94, %s97
      %p106 = scmp.eq.s32.totalorder %s21, 1
      %p107 = por %p105, %p106
      %p108 = scmp.ne.s32.totalorder %s97, %s98
      %p109 = scmp.eq.s32.totalorder %s21, 0
      %p110 = por %p108, %p109
      %p111 = scmp.ne.s32.totalorder %s97, %s98
      %p112 = scmp.eq.s32.totalorder %s22, 1
      %p113 = por %p111, %p112
      %p115 = scmp.ne.s32.totalorder %s98, %s114
      %p116 = scmp.eq.s32.totalorder %s22, 0
      %p117 = por %p115, %p116
      %p118 = scmp.le.s32.totalorder 1, %s16
      %p119 = scmp.lt.s32.totalorder %s16, 3
      %p120 = pnand %p118, %p119
      %p121 = pneg %p120
      // Predicated region
      $region9: #{tpu_custom_call.1} parent=5 // pred_check
        _
      $region10: #{tpu_custom_call.1} parent=5 // pred_check_branch
        %123 = sbr.rel (%p120) target = $region12
      $region11: #{tpu_custom_call.1} parent=5 // pred_region
        %s124 = ssub.s32 %s16, 1
        // Predicated region
        $region13: #{tpu_custom_call.1} parent=11 // pred_check
          %p125 = pneg %p63
        $region14: #{tpu_custom_call.1} parent=11 // pred_check_branch
          %127 = sbr.rel (%p125) target = $region16
        $region15: #{tpu_custom_call.1} parent=11 // pred_region
          %s129 = ssub.s32 2048, 2048
          %130 = vsyncadd [#allocation6], %s129
          %s131 = sshll.u32 [#allocation5], 4
          %s132 = int_to_ptr.vmem [resolvable:$true] %s131
          %137 = dma.hbm_to_vmem [thread:$0]  %s1, 2048, %s132, [#allocation6], 128, 128, 8
        $region16: #{tpu_custom_call.1} parent=11 // pred_fallthru
          _
        // Predicated region
        $region17: #{tpu_custom_call.1} parent=11 // pred_check
          %p138 = pneg %p84
        $region18: #{tpu_custom_call.1} parent=11 // pred_check_branch
          %140 = sbr.rel (%p138) target = $region20
        $region19: #{tpu_custom_call.1} parent=11 // pred_region
          %s142 = ssub.s32 128, 128
          %143 = vsyncadd [#allocation6], %s142
          %s145 = sshll.u32 [#allocation7], 4
          %s146 = int_to_ptr.vmem [resolvable:$true] %s145
          %148 = dma.hbm_to_vmem [thread:$0]  %s2, 128, %s146, [#allocation6]
        $region20: #{tpu_custom_call.1} parent=11 // pred_fallthru
          _
      $region12: #{tpu_custom_call.1} parent=5 // pred_fallthru
        _
      %p149 = scmp.lt.s32.totalorder %s16, 2
      // Predicated region
      $region21: #{tpu_custom_call.1} parent=5 // pred_check
        %p150 = pneg %p149
      $region22: #{tpu_custom_call.1} parent=5 // pred_check_branch
        %152 = sbr.rel (%p150) target = $region24
      $region23: #{tpu_custom_call.1} parent=5 // pred_region
        // Predicated region
        $region25: #{tpu_custom_call.1} parent=23 // pred_check
          %p153 = pneg %p36
        $region26: #{tpu_custom_call.1} parent=23 // pred_check_branch
          %155 = sbr.rel (%p153) target = $region28
        $region27: #{tpu_custom_call.1} parent=23 // pred_region
          %s156 = sand.u32 %s26, 1
          %s157 = scalar_lea.sflag [#allocation3], %s156
          %s158 = sand.u32 %s26, 1
          %s159 = smul.addr %s158, 8
          %s160 = scalar_lea.vmem [#allocation2], %s159
          %s162 = ssub.s32 128, 128
          %163 = vsyncadd %s157, %s162
          %s164 = smul.addr %s16, 128
          %s165 = scalar_lea.hbm %s0, %s164
          %s167 = sshll.u32 %s160, 4
          %s168 = int_to_ptr.vmem [resolvable:$true] %s167
          %170 = dma.hbm_to_vmem [thread:$0]  %s165, 128, %s168, %s157
        $region28: #{tpu_custom_call.1} parent=23 // pred_fallthru
          _
      $region24: #{tpu_custom_call.1} parent=5 // pred_fallthru
        _
      %p171 = scmp.le.s32.totalorder 1, %s16
      %p172 = scmp.lt.s32.totalorder %s16, 3
      %p173 = pnand %p171, %p172
      %p174 = pneg %p173
      // Predicated region
      $region29: #{tpu_custom_call.1} parent=5 // pred_check
        _
      $region30: #{tpu_custom_call.1} parent=5 // pred_check_branch
        %176 = sbr.rel (%p173) target = $region32
      $region31: #{tpu_custom_call.1} parent=5 // pred_region
        %s177 = ssub.s32 %s16, 1
        %s178 = sand.u32 %s29, 1
        %s179 = scalar_lea.sflag [#allocation3], %s178
        %s180 = sand.u32 %s29, 1
        %s181 = smul.addr %s180, 8
        %s182 = scalar_lea.vmem [#allocation2], %s181
        // Predicated region
        $region33: #{tpu_custom_call.1} parent=31 // pred_check
          %p183 = pneg %p42
        $region34: #{tpu_custom_call.1} parent=31 // pred_check_branch
          %185 = sbr.rel (%p183) target = $region36
        $region35: #{tpu_custom_call.1} parent=31 // pred_region
          %186 = dma.done %s179, 128
        $region36: #{tpu_custom_call.1} parent=31 // pred_fallthru
          _
        // Predicated region
        $region37: #{tpu_custom_call.1} parent=31 // pred_check
          %p187 = pneg %p63
        $region38: #{tpu_custom_call.1} parent=31 // pred_check_branch
          %189 = sbr.rel (%p187) target = $region40
        $region39: #{tpu_custom_call.1} parent=31 // pred_region
          %190 = dma.done [#allocation6], 2048
        $region40: #{tpu_custom_call.1} parent=31 // pred_fallthru
          _
        // Predicated region
        $region41: #{tpu_custom_call.1} parent=31 // pred_check
          %p191 = pneg %p84
        $region42: #{tpu_custom_call.1} parent=31 // pred_check_branch
          %193 = sbr.rel (%p191) target = $region44
        $region43: #{tpu_custom_call.1} parent=31 // pred_region
          %194 = dma.done [#allocation6], 128
        $region44: #{tpu_custom_call.1} parent=31 // pred_fallthru
          _
        %s195 = sand.u32 %s29, 1
        %s196 = scalar_lea.sflag [#allocation3], %s195
        %s197 = sand.u32 %s29, 1
        %s198 = smul.addr %s197, 8
        %s199 = scalar_lea.vmem [#allocation2], %s198
        %p200 = pneg %p42
        %p201 = pneg %p39
        %p202 = pneg %p63
        %p203 = pneg %p60
        %p204 = pneg %p84
        %p205 = pneg %p81
        %p206 = pneg %p110
        %p207 = pneg %p107
        %s208 = sand.u32 %s97, 1
        %s209 = scalar_lea.sflag [#allocation4], %s208
        %s210 = sand.u32 %s97, 1
        %s211 = smul.addr %s210, 8
        %s212 = scalar_lea.vmem [#allocation8], %s211
        %v213 = vld [vmem:[%s182] sm:$0xff]
        %v214 = vld [vmem:[#allocation5] sm:$0xff]
        %v215 = vld [vmem:[#allocation5 + $0x8] sm:$0xff]
        %v216 = vld [vmem:[#allocation5 + $0x10] sm:$0xff]
        %v217 = vld [vmem:[#allocation5 + $0x18] sm:$0xff]
        %s218 = scalar_lea.vmem [#allocation5], 32
        %v219 = vld [vmem:[%s218] sm:$0xff]
        %v220 = vld [vmem:[%s218 + $0x8] sm:$0xff]
        %v221 = vld [vmem:[%s218 + $0x10] sm:$0xff]
        %v222 = vld [vmem:[%s218 + $0x18] sm:$0xff]
        %s223 = scalar_lea.vmem [#allocation5], 64
        %v224 = vld [vmem:[%s223] sm:$0xff]
        %v225 = vld [vmem:[%s223 + $0x8] sm:$0xff]
        %v226 = vld [vmem:[%s223 + $0x10] sm:$0xff]
        %v227 = vld [vmem:[%s223 + $0x18] sm:$0xff]
        %s228 = scalar_lea.vmem [#allocation5], 96
        %v229 = vld [vmem:[%s228] sm:$0xff]
        %v230 = vld [vmem:[%s228 + $0x8] sm:$0xff]
        %v231 = vld [vmem:[%s228 + $0x10] sm:$0xff]
        %v232 = vld [vmem:[%s228 + $0x18] sm:$0xff]
        %v233 = vld [vmem:[#allocation7] sm:$0xff]
        %v234 = vlaneseq
        %v235 = vshrl.u32 %v234, 7
        %v236 = vsub.s32 0, %v235
        %v237 = vrot.slane %v233, %v236
        %vm238 = vcmask 261120
        %v240 = vsel %vm238, %v213, 0
        %242 = vmatprep.subr.mxu0 0.0
        %243 = vmatpush1.msra.mxu0 0.0
        %244 = vmatprep.subr.mxu0 0.0
        %245 = vmatpush1.msra.mxu0 0.0
        %246 = vmatprep.subr.mxu0 0.0
        %247 = vmatpush1.msra.mxu0 0.0
        %248 = vmatprep.subr.mxu0 0.0
        %249 = vmatpush1.msra.mxu0 0.0
        %250 = vmatprep.subr.mxu0 0.0
        %251 = vmatpush1.msra.mxu0 0.0
        %252 = vmatprep.subr.mxu0 0.0
        %253 = vmatpush1.msra.mxu0 0.0
        %254 = vmatprep.subr.mxu0 0.0
        %255 = vmatpush1.msra.mxu0 0.0
        %256 = vmatprep.subr.mxu0 0.0
        %257 = vmatpush1.msra.mxu0 0.0
        %258 = vmatprep.subr.mxu0 0.0
        %259 = vmatpush1.msra.mxu0 0.0
        %260 = vmatprep.subr.mxu0 0.0
        %261 = vmatpush1.msra.mxu0 0.0
        %262 = vmatprep.subr.mxu0 0.0
        %263 = vmatpush1.msra.mxu0 0.0
        %264 = vmatprep.subr.mxu0 0.0
        %265 = vmatpush1.msra.mxu0 0.0
        %266 = vmatprep.subr.mxu0 0.0
        %267 = vmatpush1.msra.mxu0 %v217
        %268 = vmatprep.subr.mxu0 0.0
        %269 = vmatpush1.msra.mxu0 %v216
        %270 = vmatprep.subr.mxu0 0.0
        %271 = vmatpush1.msra.mxu0 %v215
        %272 = vmatprep.subr.mxu0 0.0
        %273 = vmatpush1.msra.mxu0 %v214
        %274 = vmatprep.subr.mxu0 0.0
        %275 = vmatpush2.msra.mxu0 0.0
        %276 = vmatprep.subr.mxu0 0.0
        %277 = vmatpush2.msra.mxu0 0.0
        %278 = vmatprep.subr.mxu0 0.0
        %279 = vmatpush2.msra.mxu0 0.0
        %280 = vmatprep.subr.mxu0 0.0
        %281 = vmatpush2.msra.mxu0 0.0
        %282 = vmatprep.subr.mxu0 0.0
        %283 = vmatpush2.msra.mxu0 0.0
        %284 = vmatprep.subr.mxu0 0.0
        %285 = vmatpush2.msra.mxu0 0.0
        %286 = vmatprep.subr.mxu0 0.0
        %287 = vmatpush2.msra.mxu0 0.0
        %288 = vmatprep.subr.mxu0 0.0
        %289 = vmatpush2.msra.mxu0 0.0
        %290 = vmatprep.subr.mxu0 0.0
        %291 = vmatpush2.msra.mxu0 0.0
        %292 = vmatprep.subr.mxu0 0.0
        %293 = vmatpush2.msra.mxu0 0.0
        %294 = vmatprep.subr.mxu0 0.0
        %295 = vmatpush2.msra.mxu0 0.0
        %296 = vmatprep.subr.mxu0 0.0
        %297 = vmatpush2.msra.mxu0 0.0
        %298 = vmatprep.subr.mxu0 0.0
        %299 = vmatpush2.msra.mxu0 0.0
        %300 = vmatprep.subr.mxu0 0.0
        %301 = vmatpush2.msra.mxu0 0.0
        %302 = vmatprep.subr.mxu0 0.0
        %303 = vmatpush2.msra.mxu0 0.0
        %304 = vmatprep.subr.mxu0 0.0
        %305 = vmatpush2.msra.mxu0 0.0
        %306 = vmatprep.mubr.f32.mxu0 0.0
        %307 = vmatmul.mubr.f32.gmra.mxu0 %v240
        %v308 = vpop.f32.mrf.mxu0
        %v309 = vadd.f32 %v237, %v308
        %v310 = vpop.f32.mrf.mxu0
        %311 = vdwg.mxu0
        %v312 = vmul.f32 %v309, 0.35355338
        %314 = vrot.lane.b32.xlu0 %v309, 96
        %v315 = vpop.permute.xlu0 %314
        %vm316 = vcmask 64512
        %v318 = vsel %vm316, %v312, 0
        %v320 = vsel %vm316, %v315, 0
        %322 = vmatprep.subr.mxu0 0.0
        %323 = vmatpush1.xpose.msra.mxu0 0.0
        %324 = vmatprep.subr.mxu0 0.0
        %325 = vmatpush1.xpose.msra.mxu0 0.0
        %326 = vmatprep.subr.mxu0 0.0
        %327 = vmatpush1.xpose.msra.mxu0 0.0
        %328 = vmatprep.subr.mxu0 0.0
        %329 = vmatpush1.xpose.msra.mxu0 0.0
        %330 = vmatprep.subr.mxu0 0.0
        %331 = vmatpush1.xpose.msra.mxu0 0.0
        %332 = vmatprep.subr.mxu0 0.0
        %333 = vmatpush1.xpose.msra.mxu0 0.0
        %334 = vmatprep.subr.mxu0 0.0
        %335 = vmatpush1.xpose.msra.mxu0 0.0
        %336 = vmatprep.subr.mxu0 0.0
        %337 = vmatpush1.xpose.msra.mxu0 0.0
        %338 = vmatprep.subr.mxu0 0.0
        %339 = vmatpush1.xpose.msra.mxu0 0.0
        %340 = vmatprep.subr.mxu0 0.0
        %341 = vmatpush1.xpose.msra.mxu0 0.0
        %342 = vmatprep.subr.mxu0 0.0
        %343 = vmatpush1.xpose.msra.mxu0 0.0
        %344 = vmatprep.subr.mxu0 0.0
        %345 = vmatpush1.xpose.msra.mxu0 0.0
        %346 = vmatprep.subr.mxu0 0.0
        %347 = vmatpush1.xpose.msra.mxu0 0.0
        %348 = vmatprep.subr.mxu0 0.0
        %349 = vmatpush1.xpose.msra.mxu0 0.0
        %350 = vmatprep.subr.mxu0 0.0
        %351 = vmatpush1.xpose.msra.mxu0 0.0
        %352 = vmatprep.subr.mxu0 0.0
        %353 = vmatpush1.xpose.msra.mxu0 %v320
        %354 = vmatprep.subr.mxu0 0.0
        %355 = vmatpush2.xpose.msra.mxu0 0.0
        %356 = vmatprep.subr.mxu0 0.0
        %357 = vmatpush2.xpose.msra.mxu0 0.0
        %358 = vmatprep.subr.mxu0 0.0
        %359 = vmatpush2.xpose.msra.mxu0 0.0
        %360 = vmatprep.subr.mxu0 0.0
        %361 = vmatpush2.xpose.msra.mxu0 0.0
        %362 = vmatprep.subr.mxu0 0.0
        %363 = vmatpush2.xpose.msra.mxu0 0.0
        %364 = vmatprep.subr.mxu0 0.0
        %365 = vmatpush2.xpose.msra.mxu0 0.0
        %366 = vmatprep.subr.mxu0 0.0
        %367 = vmatpush2.xpose.msra.mxu0 0.0
        %368 = vmatprep.subr.mxu0 0.0
        %369 = vmatpush2.xpose.msra.mxu0 0.0
        %370 = vmatprep.subr.mxu0 0.0
        %371 = vmatpush2.xpose.msra.mxu0 0.0
        %372 = vmatprep.subr.mxu0 0.0
        %373 = vmatpush2.xpose.msra.mxu0 0.0
        %374 = vmatprep.subr.mxu0 0.0
        %375 = vmatpush2.xpose.msra.mxu0 0.0
        %376 = vmatprep.subr.mxu0 0.0
        %377 = vmatpush2.xpose.msra.mxu0 0.0
        %378 = vmatprep.subr.mxu0 0.0
        %379 = vmatpush2.xpose.msra.mxu0 0.0
        %380 = vmatprep.subr.mxu0 0.0
        %381 = vmatpush2.xpose.msra.mxu0 0.0
        %382 = vmatprep.subr.mxu0 0.0
        %383 = vmatpush2.xpose.msra.mxu0 0.0
        %384 = vmatprep.subr.mxu0 0.0
        %385 = vmatpush2.xpose.msra.mxu0 0.0
        %386 = vmatprep.mubr.f32.mxu0 0.0
        %387 = vmatmul.mubr.f32.gmra.mxu0 %v318
        %v388 = vpop.f32.mrf.mxu0
        %v389 = vadd.f32 0.0, %v388
        %v390 = vpop.f32.mrf.mxu0
        %391 = vdwg.mxu0
        %v392 = vsel %vm316, %v389, -inf
        %393 = vmax.xlane.f32.xlu0 %v392
        %v394 = vpop.xlane.xlu0 %393
        %v395 = vsub.f32 %v389, %v394
        %v396 = vmul.f32 %v395, 1.442695
        %v397 = vpow.pop %v396
        %v398 = vsel %vm316, %v397, 0.0
        %399 = vadd.xlane.f32.xlu0 %v398
        %v400 = vpop.xlane.xlu0 %399
        %v401 = vrcp.pop %v400
        %v402 = vmul.f32 %v397, %v401
        %403 = vrot.lane.b32.xlu0 %v309, 64
        %v404 = vpop.permute.xlu0 %403
        %v407 = vsel %vm316, %v402, 0
        %409 = vmatprep.subr.mxu0 0.0
        %410 = vmatpush1.msra.mxu0 0.0
        %411 = vmatprep.subr.mxu0 0.0
        %412 = vmatpush1.msra.mxu0 0.0
        %413 = vmatprep.subr.mxu0 0.0
        %414 = vmatpush1.msra.mxu0 0.0
        %415 = vmatprep.subr.mxu0 0.0
        %416 = vmatpush1.msra.mxu0 0.0
        %417 = vmatprep.subr.mxu0 0.0
        %418 = vmatpush1.msra.mxu0 0.0
        %419 = vmatprep.subr.mxu0 0.0
        %420 = vmatpush1.msra.mxu0 0.0
        %421 = vmatprep.subr.mxu0 0.0
        %422 = vmatpush1.msra.mxu0 0.0
        %423 = vmatprep.subr.mxu0 0.0
        %424 = vmatpush1.msra.mxu0 0.0
        %425 = vmatprep.subr.mxu0 0.0
        %426 = vmatpush1.msra.mxu0 0.0
        %427 = vmatprep.subr.mxu0 0.0
        %428 = vmatpush1.msra.mxu0 0.0
        %429 = vmatprep.subr.mxu0 0.0
        %430 = vmatpush1.msra.mxu0 0.0
        %431 = vmatprep.subr.mxu0 0.0
        %432 = vmatpush1.msra.mxu0 0.0
        %433 = vmatprep.subr.mxu0 0.0
        %434 = vmatpush1.msra.mxu0 0.0
        %435 = vmatprep.subr.mxu0 0.0
        %436 = vmatpush1.msra.mxu0 0.0
        %437 = vmatprep.subr.mxu0 0.0
        %438 = vmatpush1.msra.mxu0 0.0
        %439 = vmatprep.subr.mxu0 0.0
        %440 = vmatpush1.msra.mxu0 %v404
        %441 = vmatprep.subr.mxu0 0.0
        %442 = vmatpush2.msra.mxu0 0.0
        %443 = vmatprep.subr.mxu0 0.0
        %444 = vmatpush2.msra.mxu0 0.0
        %445 = vmatprep.subr.mxu0 0.0
        %446 = vmatpush2.msra.mxu0 0.0
        %447 = vmatprep.subr.mxu0 0.0
        %448 = vmatpush2.msra.mxu0 0.0
        %449 = vmatprep.subr.mxu0 0.0
        %450 = vmatpush2.msra.mxu0 0.0
        %451 = vmatprep.subr.mxu0 0.0
        %452 = vmatpush2.msra.mxu0 0.0
        %453 = vmatprep.subr.mxu0 0.0
        %454 = vmatpush2.msra.mxu0 0.0
        %455 = vmatprep.subr.mxu0 0.0
        %456 = vmatpush2.msra.mxu0 0.0
        %457 = vmatprep.subr.mxu0 0.0
        %458 = vmatpush2.msra.mxu0 0.0
        %459 = vmatprep.subr.mxu0 0.0
        %460 = vmatpush2.msra.mxu0 0.0
        %461 = vmatprep.subr.mxu0 0.0
        %462 = vmatpush2.msra.mxu0 0.0
        %463 = vmatprep.subr.mxu0 0.0
        %464 = vmatpush2.msra.mxu0 0.0
        %465 = vmatprep.subr.mxu0 0.0
        %466 = vmatpush2.msra.mxu0 0.0
        %467 = vmatprep.subr.mxu0 0.0
        %468 = vmatpush2.msra.mxu0 0.0
        %469 = vmatprep.subr.mxu0 0.0
        %470 = vmatpush2.msra.mxu0 0.0
        %471 = vmatprep.subr.mxu0 0.0
        %472 = vmatpush2.msra.mxu0 0.0
        %473 = vmatprep.mubr.f32.mxu0 0.0
        %474 = vmatmul.mubr.f32.gmra.mxu0 %v407
        %v475 = vpop.f32.mrf.mxu0
        %v476 = vadd.f32 0.0, %v475
        %v477 = vpop.f32.mrf.mxu0
        %478 = vdwg.mxu0
        %479 = vrot.lane.b32.xlu0 %v312, 120
        %v480 = vpop.permute.xlu0 %479
        %481 = vrot.lane.b32.xlu0 %v309, 88
        %v482 = vpop.permute.xlu0 %481
        %v483 = vsel %vm316, %v480, 0
        %v485 = vsel %vm316, %v482, 0
        %487 = vmatprep.subr.mxu0 0.0
        %488 = vmatpush1.xpose.msra.mxu0 0.0
        %489 = vmatprep.subr.mxu0 0.0
        %490 = vmatpush1.xpose.msra.mxu0 0.0
        %491 = vmatprep.subr.mxu0 0.0
        %492 = vmatpush1.xpose.msra.mxu0 0.0
        %493 = vmatprep.subr.mxu0 0.0
        %494 = vmatpush1.xpose.msra.mxu0 0.0
        %495 = vmatprep.subr.mxu0 0.0
        %496 = vmatpush1.xpose.msra.mxu0 0.0
        %497 = vmatprep.subr.mxu0 0.0
        %498 = vmatpush1.xpose.msra.mxu0 0.0
        %499 = vmatprep.subr.mxu0 0.0
        %500 = vmatpush1.xpose.msra.mxu0 0.0
        %501 = vmatprep.subr.mxu0 0.0
        %502 = vmatpush1.xpose.msra.mxu0 0.0
        %503 = vmatprep.subr.mxu0 0.0
        %504 = vmatpush1.xpose.msra.mxu0 0.0
        %505 = vmatprep.subr.mxu0 0.0
        %506 = vmatpush1.xpose.msra.mxu0 0.0
        %507 = vmatprep.subr.mxu0 0.0
        %508 = vmatpush1.xpose.msra.mxu0 0.0
        %509 = vmatprep.subr.mxu0 0.0
        %510 = vmatpush1.xpose.msra.mxu0 0.0
        %511 = vmatprep.subr.mxu0 0.0
        %512 = vmatpush1.xpose.msra.mxu0 0.0
        %513 = vmatprep.subr.mxu0 0.0
        %514 = vmatpush1.xpose.msra.mxu0 0.0
        %515 = vmatprep.subr.mxu0 0.0
        %516 = vmatpush1.xpose.msra.mxu0 0.0
        %517 = vmatprep.subr.mxu0 0.0
        %518 = vmatpush1.xpose.msra.mxu0 %v485
        %519 = vmatprep.subr.mxu0 0.0
        %520 = vmatpush2.xpose.msra.mxu0 0.0
        %521 = vmatprep.subr.mxu0 0.0
        %522 = vmatpush2.xpose.msra.mxu0 0.0
        %523 = vmatprep.subr.mxu0 0.0
        %524 = vmatpush2.xpose.msra.mxu0 0.0
        %525 = vmatprep.subr.mxu0 0.0
        %526 = vmatpush2.xpose.msra.mxu0 0.0
        %527 = vmatprep.subr.mxu0 0.0
        %528 = vmatpush2.xpose.msra.mxu0 0.0
        %529 = vmatprep.subr.mxu0 0.0
        %530 = vmatpush2.xpose.msra.mxu0 0.0
        %531 = vmatprep.subr.mxu0 0.0
        %532 = vmatpush2.xpose.msra.mxu0 0.0
        %533 = vmatprep.subr.mxu0 0.0
        %534 = vmatpush2.xpose.msra.mxu0 0.0
        %535 = vmatprep.subr.mxu0 0.0
        %536 = vmatpush2.xpose.msra.mxu0 0.0
        %537 = vmatprep.subr.mxu0 0.0
        %538 = vmatpush2.xpose.msra.mxu0 0.0
        %539 = vmatprep.subr.mxu0 0.0
        %540 = vmatpush2.xpose.msra.mxu0 0.0
        %541 = vmatprep.subr.mxu0 0.0
        %542 = vmatpush2.xpose.msra.mxu0 0.0
        %543 = vmatprep.subr.mxu0 0.0
        %544 = vmatpush2.xpose.msra.mxu0 0.0
        %545 = vmatprep.subr.mxu0 0.0
        %546 = vmatpush2.xpose.msra.mxu0 0.0
        %547 = vmatprep.subr.mxu0 0.0
        %548 = vmatpush2.xpose.msra.mxu0 0.0
        %549 = vmatprep.subr.mxu0 0.0
        %550 = vmatpush2.xpose.msra.mxu0 0.0
        %551 = vmatprep.mubr.f32.mxu0 0.0
        %552 = vmatmul.mubr.f32.gmra.mxu0 %v483
        %v553 = vpop.f32.mrf.mxu0
        %v554 = vadd.f32 0.0, %v553
        %v555 = vpop.f32.mrf.mxu0
        %556 = vdwg.mxu0
        %v557 = vsel %vm316, %v554, -inf
        %558 = vmax.xlane.f32.xlu0 %v557
        %v559 = vpop.xlane.xlu0 %558
        %v560 = vsub.f32 %v554, %v559
        %v561 = vmul.f32 %v560, 1.442695
        %v562 = vpow.pop %v561
        %v563 = vsel %vm316, %v562, 0.0
        %564 = vadd.xlane.f32.xlu0 %v563
        %v565 = vpop.xlane.xlu0 %564
        %v566 = vrcp.pop %v565
        %v567 = vmul.f32 %v562, %v566
        %568 = vrot.lane.b32.xlu0 %v309, 56
        %v569 = vpop.permute.xlu0 %568
        %v572 = vsel %vm316, %v567, 0
        %574 = vmatprep.subr.mxu0 0.0
        %575 = vmatpush1.msra.mxu0 0.0
        %576 = vmatprep.subr.mxu0 0.0
        %577 = vmatpush1.msra.mxu0 0.0
        %578 = vmatprep.subr.mxu0 0.0
        %579 = vmatpush1.msra.mxu0 0.0
        %580 = vmatprep.subr.mxu0 0.0
        %581 = vmatpush1.msra.mxu0 0.0
        %582 = vmatprep.subr.mxu0 0.0
        %583 = vmatpush1.msra.mxu0 0.0
        %584 = vmatprep.subr.mxu0 0.0
        %585 = vmatpush1.msra.mxu0 0.0
        %586 = vmatprep.subr.mxu0 0.0
        %587 = vmatpush1.msra.mxu0 0.0
        %588 = vmatprep.subr.mxu0 0.0
        %589 = vmatpush1.msra.mxu0 0.0
        %590 = vmatprep.subr.mxu0 0.0
        %591 = vmatpush1.msra.mxu0 0.0
        %592 = vmatprep.subr.mxu0 0.0
        %593 = vmatpush1.msra.mxu0 0.0
        %594 = vmatprep.subr.mxu0 0.0
        %595 = vmatpush1.msra.mxu0 0.0
        %596 = vmatprep.subr.mxu0 0.0
        %597 = vmatpush1.msra.mxu0 0.0
        %598 = vmatprep.subr.mxu0 0.0
        %599 = vmatpush1.msra.mxu0 0.0
        %600 = vmatprep.subr.mxu0 0.0
        %601 = vmatpush1.msra.mxu0 0.0
        %602 = vmatprep.subr.mxu0 0.0
        %603 = vmatpush1.msra.mxu0 0.0
        %604 = vmatprep.subr.mxu0 0.0
        %605 = vmatpush1.msra.mxu0 %v569
        %606 = vmatprep.subr.mxu0 0.0
        %607 = vmatpush2.msra.mxu0 0.0
        %608 = vmatprep.subr.mxu0 0.0
        %609 = vmatpush2.msra.mxu0 0.0
        %610 = vmatprep.subr.mxu0 0.0
        %611 = vmatpush2.msra.mxu0 0.0
        %612 = vmatprep.subr.mxu0 0.0
        %613 = vmatpush2.msra.mxu0 0.0
        %614 = vmatprep.subr.mxu0 0.0
        %615 = vmatpush2.msra.mxu0 0.0
        %616 = vmatprep.subr.mxu0 0.0
        %617 = vmatpush2.msra.mxu0 0.0
        %618 = vmatprep.subr.mxu0 0.0
        %619 = vmatpush2.msra.mxu0 0.0
        %620 = vmatprep.subr.mxu0 0.0
        %621 = vmatpush2.msra.mxu0 0.0
        %622 = vmatprep.subr.mxu0 0.0
        %623 = vmatpush2.msra.mxu0 0.0
        %624 = vmatprep.subr.mxu0 0.0
        %625 = vmatpush2.msra.mxu0 0.0
        %626 = vmatprep.subr.mxu0 0.0
        %627 = vmatpush2.msra.mxu0 0.0
        %628 = vmatprep.subr.mxu0 0.0
        %629 = vmatpush2.msra.mxu0 0.0
        %630 = vmatprep.subr.mxu0 0.0
        %631 = vmatpush2.msra.mxu0 0.0
        %632 = vmatprep.subr.mxu0 0.0
        %633 = vmatpush2.msra.mxu0 0.0
        %634 = vmatprep.subr.mxu0 0.0
        %635 = vmatpush2.msra.mxu0 0.0
        %636 = vmatprep.subr.mxu0 0.0
        %637 = vmatpush2.msra.mxu0 0.0
        %638 = vmatprep.mubr.f32.mxu0 0.0
        %639 = vmatmul.mubr.f32.gmra.mxu0 %v572
        %v640 = vpop.f32.mrf.mxu0
        %v641 = vadd.f32 0.0, %v640
        %v642 = vpop.f32.mrf.mxu0
        %643 = vdwg.mxu0
        %v645 = vsel %vm316, %v641, 0
        %647 = vmatprep.subr.mxu0 0.0
        %648 = vmatpush1.msra.mxu0 0.0
        %649 = vmatprep.subr.mxu0 0.0
        %650 = vmatpush1.msra.mxu0 0.0
        %651 = vmatprep.subr.mxu0 0.0
        %652 = vmatpush1.msra.mxu0 0.0
        %653 = vmatprep.subr.mxu0 0.0
        %654 = vmatpush1.msra.mxu0 0.0
        %655 = vmatprep.subr.mxu0 0.0
        %656 = vmatpush1.msra.mxu0 0.0
        %657 = vmatprep.subr.mxu0 0.0
        %658 = vmatpush1.msra.mxu0 0.0
        %659 = vmatprep.subr.mxu0 0.0
        %660 = vmatpush1.msra.mxu0 0.0
        %661 = vmatprep.subr.mxu0 0.0
        %662 = vmatpush1.msra.mxu0 0.0
        %663 = vmatprep.subr.mxu0 0.0
        %664 = vmatpush1.msra.mxu0 0.0
        %665 = vmatprep.subr.mxu0 0.0
        %666 = vmatpush1.msra.mxu0 0.0
        %667 = vmatprep.subr.mxu0 0.0
        %668 = vmatpush1.msra.mxu0 0.0
        %669 = vmatprep.subr.mxu0 0.0
        %670 = vmatpush1.msra.mxu0 0.0
        %671 = vmatprep.subr.mxu0 0.0
        %672 = vmatpush1.msra.mxu0 0.0
        %673 = vmatprep.subr.mxu0 0.0
        %674 = vmatpush1.msra.mxu0 0.0
        %675 = vmatprep.subr.mxu0 0.0
        %676 = vmatpush1.msra.mxu0 0.0
        %677 = vmatprep.subr.mxu0 0.0
        %678 = vmatpush1.msra.mxu0 %v220
        %679 = vmatprep.subr.mxu0 0.0
        %680 = vmatpush2.msra.mxu0 0.0
        %681 = vmatprep.subr.mxu0 0.0
        %682 = vmatpush2.msra.mxu0 0.0
        %683 = vmatprep.subr.mxu0 0.0
        %684 = vmatpush2.msra.mxu0 0.0
        %685 = vmatprep.subr.mxu0 0.0
        %686 = vmatpush2.msra.mxu0 0.0
        %687 = vmatprep.subr.mxu0 0.0
        %688 = vmatpush2.msra.mxu0 0.0
        %689 = vmatprep.subr.mxu0 0.0
        %690 = vmatpush2.msra.mxu0 0.0
        %691 = vmatprep.subr.mxu0 0.0
        %692 = vmatpush2.msra.mxu0 0.0
        %693 = vmatprep.subr.mxu0 0.0
        %694 = vmatpush2.msra.mxu0 0.0
        %695 = vmatprep.subr.mxu0 0.0
        %696 = vmatpush2.msra.mxu0 0.0
        %697 = vmatprep.subr.mxu0 0.0
        %698 = vmatpush2.msra.mxu0 0.0
        %699 = vmatprep.subr.mxu0 0.0
        %700 = vmatpush2.msra.mxu0 0.0
        %701 = vmatprep.subr.mxu0 0.0
        %702 = vmatpush2.msra.mxu0 0.0
        %703 = vmatprep.subr.mxu0 0.0
        %704 = vmatpush2.msra.mxu0 0.0
        %705 = vmatprep.subr.mxu0 0.0
        %706 = vmatpush2.msra.mxu0 0.0
        %707 = vmatprep.subr.mxu0 0.0
        %708 = vmatpush2.msra.mxu0 0.0
        %709 = vmatprep.subr.mxu0 0.0
        %710 = vmatpush2.msra.mxu0 0.0
        %711 = vmatprep.mubr.f32.mxu0 0.0
        %712 = vmatmul.mubr.f32.gmra.mxu0 %v645
        %v713 = vpop.f32.mrf.mxu0
        %v714 = vadd.f32 0.0, %v713
        %v715 = vpop.f32.mrf.mxu0
        %716 = vdwg.mxu0
        %v718 = vsel %vm316, %v476, 0
        %720 = vmatprep.subr.mxu0 0.0
        %721 = vmatpush1.msra.mxu0 0.0
        %722 = vmatprep.subr.mxu0 0.0
        %723 = vmatpush1.msra.mxu0 0.0
        %724 = vmatprep.subr.mxu0 0.0
        %725 = vmatpush1.msra.mxu0 0.0
        %726 = vmatprep.subr.mxu0 0.0
        %727 = vmatpush1.msra.mxu0 0.0
        %728 = vmatprep.subr.mxu0 0.0
        %729 = vmatpush1.msra.mxu0 0.0
        %730 = vmatprep.subr.mxu0 0.0
        %731 = vmatpush1.msra.mxu0 0.0
        %732 = vmatprep.subr.mxu0 0.0
        %733 = vmatpush1.msra.mxu0 0.0
        %734 = vmatprep.subr.mxu0 0.0
        %735 = vmatpush1.msra.mxu0 0.0
        %736 = vmatprep.subr.mxu0 0.0
        %737 = vmatpush1.msra.mxu0 0.0
        %738 = vmatprep.subr.mxu0 0.0
        %739 = vmatpush1.msra.mxu0 0.0
        %740 = vmatprep.subr.mxu0 0.0
        %741 = vmatpush1.msra.mxu0 0.0
        %742 = vmatprep.subr.mxu0 0.0
        %743 = vmatpush1.msra.mxu0 0.0
        %744 = vmatprep.subr.mxu0 0.0
        %745 = vmatpush1.msra.mxu0 0.0
        %746 = vmatprep.subr.mxu0 0.0
        %747 = vmatpush1.msra.mxu0 0.0
        %748 = vmatprep.subr.mxu0 0.0
        %749 = vmatpush1.msra.mxu0 0.0
        %750 = vmatprep.subr.mxu0 0.0
        %751 = vmatpush1.msra.mxu0 %v219
        %752 = vmatprep.subr.mxu0 0.0
        %753 = vmatpush2.msra.mxu0 0.0
        %754 = vmatprep.subr.mxu0 0.0
        %755 = vmatpush2.msra.mxu0 0.0
        %756 = vmatprep.subr.mxu0 0.0
        %757 = vmatpush2.msra.mxu0 0.0
        %758 = vmatprep.subr.mxu0 0.0
        %759 = vmatpush2.msra.mxu0 0.0
        %760 = vmatprep.subr.mxu0 0.0
        %761 = vmatpush2.msra.mxu0 0.0
        %762 = vmatprep.subr.mxu0 0.0
        %763 = vmatpush2.msra.mxu0 0.0
        %764 = vmatprep.subr.mxu0 0.0
        %765 = vmatpush2.msra.mxu0 0.0
        %766 = vmatprep.subr.mxu0 0.0
        %767 = vmatpush2.msra.mxu0 0.0
        %768 = vmatprep.subr.mxu0 0.0
        %769 = vmatpush2.msra.mxu0 0.0
        %770 = vmatprep.subr.mxu0 0.0
        %771 = vmatpush2.msra.mxu0 0.0
        %772 = vmatprep.subr.mxu0 0.0
        %773 = vmatpush2.msra.mxu0 0.0
        %774 = vmatprep.subr.mxu0 0.0
        %775 = vmatpush2.msra.mxu0 0.0
        %776 = vmatprep.subr.mxu0 0.0
        %777 = vmatpush2.msra.mxu0 0.0
        %778 = vmatprep.subr.mxu0 0.0
        %779 = vmatpush2.msra.mxu0 0.0
        %780 = vmatprep.subr.mxu0 0.0
        %781 = vmatpush2.msra.mxu0 0.0
        %782 = vmatprep.subr.mxu0 0.0
        %783 = vmatpush2.msra.mxu0 0.0
        %784 = vmatprep.mubr.f32.mxu0 0.0
        %785 = vmatmul.mubr.f32.gmra.mxu0 %v718
        %v786 = vpop.f32.mrf.mxu0
        %v787 = vadd.f32 %v714, %v786
        %v788 = vpop.f32.mrf.mxu0
        %789 = vdwg.mxu0
        %790 = vrot.lane.b32.xlu0 %v312, 112
        %v791 = vpop.permute.xlu0 %790
        %792 = vrot.lane.b32.xlu0 %v309, 80
        %v793 = vpop.permute.xlu0 %792
        %v794 = vsel %vm316, %v791, 0
        %v796 = vsel %vm316, %v793, 0
        %798 = vmatprep.subr.mxu0 0.0
        %799 = vmatpush1.xpose.msra.mxu0 0.0
        %800 = vmatprep.subr.mxu0 0.0
        %801 = vmatpush1.xpose.msra.mxu0 0.0
        %802 = vmatprep.subr.mxu0 0.0
        %803 = vmatpush1.xpose.msra.mxu0 0.0
        %804 = vmatprep.subr.mxu0 0.0
        %805 = vmatpush1.xpose.msra.mxu0 0.0
        %806 = vmatprep.subr.mxu0 0.0
        %807 = vmatpush1.xpose.msra.mxu0 0.0
        %808 = vmatprep.subr.mxu0 0.0
        %809 = vmatpush1.xpose.msra.mxu0 0.0
        %810 = vmatprep.subr.mxu0 0.0
        %811 = vmatpush1.xpose.msra.mxu0 0.0
        %812 = vmatprep.subr.mxu0 0.0
        %813 = vmatpush1.xpose.msra.mxu0 0.0
        %814 = vmatprep.subr.mxu0 0.0
        %815 = vmatpush1.xpose.msra.mxu0 0.0
        %816 = vmatprep.subr.mxu0 0.0
        %817 = vmatpush1.xpose.msra.mxu0 0.0
        %818 = vmatprep.subr.mxu0 0.0
        %819 = vmatpush1.xpose.msra.mxu0 0.0
        %820 = vmatprep.subr.mxu0 0.0
        %821 = vmatpush1.xpose.msra.mxu0 0.0
        %822 = vmatprep.subr.mxu0 0.0
        %823 = vmatpush1.xpose.msra.mxu0 0.0
        %824 = vmatprep.subr.mxu0 0.0
        %825 = vmatpush1.xpose.msra.mxu0 0.0
        %826 = vmatprep.subr.mxu0 0.0
        %827 = vmatpush1.xpose.msra.mxu0 0.0
        %828 = vmatprep.subr.mxu0 0.0
        %829 = vmatpush1.xpose.msra.mxu0 %v796
        %830 = vmatprep.subr.mxu0 0.0
        %831 = vmatpush2.xpose.msra.mxu0 0.0
        %832 = vmatprep.subr.mxu0 0.0
        %833 = vmatpush2.xpose.msra.mxu0 0.0
        %834 = vmatprep.subr.mxu0 0.0
        %835 = vmatpush2.xpose.msra.mxu0 0.0
        %836 = vmatprep.subr.mxu0 0.0
        %837 = vmatpush2.xpose.msra.mxu0 0.0
        %838 = vmatprep.subr.mxu0 0.0
        %839 = vmatpush2.xpose.msra.mxu0 0.0
        %840 = vmatprep.subr.mxu0 0.0
        %841 = vmatpush2.xpose.msra.mxu0 0.0
        %842 = vmatprep.subr.mxu0 0.0
        %843 = vmatpush2.xpose.msra.mxu0 0.0
        %844 = vmatprep.subr.mxu0 0.0
        %845 = vmatpush2.xpose.msra.mxu0 0.0
        %846 = vmatprep.subr.mxu0 0.0
        %847 = vmatpush2.xpose.msra.mxu0 0.0
        %848 = vmatprep.subr.mxu0 0.0
        %849 = vmatpush2.xpose.msra.mxu0 0.0
        %850 = vmatprep.subr.mxu0 0.0
        %851 = vmatpush2.xpose.msra.mxu0 0.0
        %852 = vmatprep.subr.mxu0 0.0
        %853 = vmatpush2.xpose.msra.mxu0 0.0
        %854 = vmatprep.subr.mxu0 0.0
        %855 = vmatpush2.xpose.msra.mxu0 0.0
        %856 = vmatprep.subr.mxu0 0.0
        %857 = vmatpush2.xpose.msra.mxu0 0.0
        %858 = vmatprep.subr.mxu0 0.0
        %859 = vmatpush2.xpose.msra.mxu0 0.0
        %860 = vmatprep.subr.mxu0 0.0
        %861 = vmatpush2.xpose.msra.mxu0 0.0
        %862 = vmatprep.mubr.f32.mxu0 0.0
        %863 = vmatmul.mubr.f32.gmra.mxu0 %v794
        %v864 = vpop.f32.mrf.mxu0
        %v865 = vadd.f32 0.0, %v864
        %v866 = vpop.f32.mrf.mxu0
        %867 = vdwg.mxu0
        %v868 = vsel %vm316, %v865, -inf
        %869 = vmax.xlane.f32.xlu0 %v868
        %v870 = vpop.xlane.xlu0 %869
        %v871 = vsub.f32 %v865, %v870
        %v872 = vmul.f32 %v871, 1.442695
        %v873 = vpow.pop %v872
        %v874 = vsel %vm316, %v873, 0.0
        %875 = vadd.xlane.f32.xlu0 %v874
        %v876 = vpop.xlane.xlu0 %875
        %v877 = vrcp.pop %v876
        %v878 = vmul.f32 %v873, %v877
        %879 = vrot.lane.b32.xlu0 %v309, 48
        %v880 = vpop.permute.xlu0 %879
        %v883 = vsel %vm316, %v878, 0
        %885 = vmatprep.subr.mxu0 0.0
        %886 = vmatpush1.msra.mxu0 0.0
        %887 = vmatprep.subr.mxu0 0.0
        %888 = vmatpush1.msra.mxu0 0.0
        %889 = vmatprep.subr.mxu0 0.0
        %890 = vmatpush1.msra.mxu0 0.0
        %891 = vmatprep.subr.mxu0 0.0
        %892 = vmatpush1.msra.mxu0 0.0
        %893 = vmatprep.subr.mxu0 0.0
        %894 = vmatpush1.msra.mxu0 0.0
        %895 = vmatprep.subr.mxu0 0.0
        %896 = vmatpush1.msra.mxu0 0.0
        %897 = vmatprep.subr.mxu0 0.0
        %898 = vmatpush1.msra.mxu0 0.0
        %899 = vmatprep.subr.mxu0 0.0
        %900 = vmatpush1.msra.mxu0 0.0
        %901 = vmatprep.subr.mxu0 0.0
        %902 = vmatpush1.msra.mxu0 0.0
        %903 = vmatprep.subr.mxu0 0.0
        %904 = vmatpush1.msra.mxu0 0.0
        %905 = vmatprep.subr.mxu0 0.0
        %906 = vmatpush1.msra.mxu0 0.0
        %907 = vmatprep.subr.mxu0 0.0
        %908 = vmatpush1.msra.mxu0 0.0
        %909 = vmatprep.subr.mxu0 0.0
        %910 = vmatpush1.msra.mxu0 0.0
        %911 = vmatprep.subr.mxu0 0.0
        %912 = vmatpush1.msra.mxu0 0.0
        %913 = vmatprep.subr.mxu0 0.0
        %914 = vmatpush1.msra.mxu0 0.0
        %915 = vmatprep.subr.mxu0 0.0
        %916 = vmatpush1.msra.mxu0 %v880
        %917 = vmatprep.subr.mxu0 0.0
        %918 = vmatpush2.msra.mxu0 0.0
        %919 = vmatprep.subr.mxu0 0.0
        %920 = vmatpush2.msra.mxu0 0.0
        %921 = vmatprep.subr.mxu0 0.0
        %922 = vmatpush2.msra.mxu0 0.0
        %923 = vmatprep.subr.mxu0 0.0
        %924 = vmatpush2.msra.mxu0 0.0
        %925 = vmatprep.subr.mxu0 0.0
        %926 = vmatpush2.msra.mxu0 0.0
        %927 = vmatprep.subr.mxu0 0.0
        %928 = vmatpush2.msra.mxu0 0.0
        %929 = vmatprep.subr.mxu0 0.0
        %930 = vmatpush2.msra.mxu0 0.0
        %931 = vmatprep.subr.mxu0 0.0
        %932 = vmatpush2.msra.mxu0 0.0
        %933 = vmatprep.subr.mxu0 0.0
        %934 = vmatpush2.msra.mxu0 0.0
        %935 = vmatprep.subr.mxu0 0.0
        %936 = vmatpush2.msra.mxu0 0.0
        %937 = vmatprep.subr.mxu0 0.0
        %938 = vmatpush2.msra.mxu0 0.0
        %939 = vmatprep.subr.mxu0 0.0
        %940 = vmatpush2.msra.mxu0 0.0
        %941 = vmatprep.subr.mxu0 0.0
        %942 = vmatpush2.msra.mxu0 0.0
        %943 = vmatprep.subr.mxu0 0.0
        %944 = vmatpush2.msra.mxu0 0.0
        %945 = vmatprep.subr.mxu0 0.0
        %946 = vmatpush2.msra.mxu0 0.0
        %947 = vmatprep.subr.mxu0 0.0
        %948 = vmatpush2.msra.mxu0 0.0
        %949 = vmatprep.mubr.f32.mxu0 0.0
        %950 = vmatmul.mubr.f32.gmra.mxu0 %v883
        %v951 = vpop.f32.mrf.mxu0
        %v952 = vadd.f32 0.0, %v951
        %v953 = vpop.f32.mrf.mxu0
        %954 = vdwg.mxu0
        %v956 = vsel %vm316, %v952, 0
        %958 = vmatprep.subr.mxu0 0.0
        %959 = vmatpush1.msra.mxu0 0.0
        %960 = vmatprep.subr.mxu0 0.0
        %961 = vmatpush1.msra.mxu0 0.0
        %962 = vmatprep.subr.mxu0 0.0
        %963 = vmatpush1.msra.mxu0 0.0
        %964 = vmatprep.subr.mxu0 0.0
        %965 = vmatpush1.msra.mxu0 0.0
        %966 = vmatprep.subr.mxu0 0.0
        %967 = vmatpush1.msra.mxu0 0.0
        %968 = vmatprep.subr.mxu0 0.0
        %969 = vmatpush1.msra.mxu0 0.0
        %970 = vmatprep.subr.mxu0 0.0
        %971 = vmatpush1.msra.mxu0 0.0
        %972 = vmatprep.subr.mxu0 0.0
        %973 = vmatpush1.msra.mxu0 0.0
        %974 = vmatprep.subr.mxu0 0.0
        %975 = vmatpush1.msra.mxu0 0.0
        %976 = vmatprep.subr.mxu0 0.0
        %977 = vmatpush1.msra.mxu0 0.0
        %978 = vmatprep.subr.mxu0 0.0
        %979 = vmatpush1.msra.mxu0 0.0
        %980 = vmatprep.subr.mxu0 0.0
        %981 = vmatpush1.msra.mxu0 0.0
        %982 = vmatprep.subr.mxu0 0.0
        %983 = vmatpush1.msra.mxu0 0.0
        %984 = vmatprep.subr.mxu0 0.0
        %985 = vmatpush1.msra.mxu0 0.0
        %986 = vmatprep.subr.mxu0 0.0
        %987 = vmatpush1.msra.mxu0 0.0
        %988 = vmatprep.subr.mxu0 0.0
        %989 = vmatpush1.msra.mxu0 %v221
        %990 = vmatprep.subr.mxu0 0.0
        %991 = vmatpush2.msra.mxu0 0.0
        %992 = vmatprep.subr.mxu0 0.0
        %993 = vmatpush2.msra.mxu0 0.0
        %994 = vmatprep.subr.mxu0 0.0
        %995 = vmatpush2.msra.mxu0 0.0
        %996 = vmatprep.subr.mxu0 0.0
        %997 = vmatpush2.msra.mxu0 0.0
        %998 = vmatprep.subr.mxu0 0.0
        %999 = vmatpush2.msra.mxu0 0.0
        %1000 = vmatprep.subr.mxu0 0.0
        %1001 = vmatpush2.msra.mxu0 0.0
        %1002 = vmatprep.subr.mxu0 0.0
        %1003 = vmatpush2.msra.mxu0 0.0
        %1004 = vmatprep.subr.mxu0 0.0
        %1005 = vmatpush2.msra.mxu0 0.0
        %1006 = vmatprep.subr.mxu0 0.0
        %1007 = vmatpush2.msra.mxu0 0.0
        %1008 = vmatprep.subr.mxu0 0.0
        %1009 = vmatpush2.msra.mxu0 0.0
        %1010 = vmatprep.subr.mxu0 0.0
        %1011 = vmatpush2.msra.mxu0 0.0
        %1012 = vmatprep.subr.mxu0 0.0
        %1013 = vmatpush2.msra.mxu0 0.0
        %1014 = vmatprep.subr.mxu0 0.0
        %1015 = vmatpush2.msra.mxu0 0.0
        %1016 = vmatprep.subr.mxu0 0.0
        %1017 = vmatpush2.msra.mxu0 0.0
        %1018 = vmatprep.subr.mxu0 0.0
        %1019 = vmatpush2.msra.mxu0 0.0
        %1020 = vmatprep.subr.mxu0 0.0
        %1021 = vmatpush2.msra.mxu0 0.0
        %1022 = vmatprep.mubr.f32.mxu0 0.0
        %1023 = vmatmul.mubr.f32.gmra.mxu0 %v956
        %v1024 = vpop.f32.mrf.mxu0
        %v1025 = vadd.f32 0.0, %v1024
        %v1026 = vpop.f32.mrf.mxu0
        %1027 = vdwg.mxu0
        %v1028 = vadd.f32 %v787, %v1025
        %1029 = vrot.lane.b32.xlu0 %v312, 104
        %v1030 = vpop.permute.xlu0 %1029
        %1031 = vrot.lane.b32.xlu0 %v309, 72
        %v1032 = vpop.permute.xlu0 %1031
        %v1033 = vsel %vm316, %v1030, 0
        %v1035 = vsel %vm316, %v1032, 0
        %1037 = vmatprep.subr.mxu0 0.0
        %1038 = vmatpush1.xpose.msra.mxu0 0.0
        %1039 = vmatprep.subr.mxu0 0.0
        %1040 = vmatpush1.xpose.msra.mxu0 0.0
        %1041 = vmatprep.subr.mxu0 0.0
        %1042 = vmatpush1.xpose.msra.mxu0 0.0
        %1043 = vmatprep.subr.mxu0 0.0
        %1044 = vmatpush1.xpose.msra.mxu0 0.0
        %1045 = vmatprep.subr.mxu0 0.0
        %1046 = vmatpush1.xpose.msra.mxu0 0.0
        %1047 = vmatprep.subr.mxu0 0.0
        %1048 = vmatpush1.xpose.msra.mxu0 0.0
        %1049 = vmatprep.subr.mxu0 0.0
        %1050 = vmatpush1.xpose.msra.mxu0 0.0
        %1051 = vmatprep.subr.mxu0 0.0
        %1052 = vmatpush1.xpose.msra.mxu0 0.0
        %1053 = vmatprep.subr.mxu0 0.0
        %1054 = vmatpush1.xpose.msra.mxu0 0.0
        %1055 = vmatprep.subr.mxu0 0.0
        %1056 = vmatpush1.xpose.msra.mxu0 0.0
        %1057 = vmatprep.subr.mxu0 0.0
        %1058 = vmatpush1.xpose.msra.mxu0 0.0
        %1059 = vmatprep.subr.mxu0 0.0
        %1060 = vmatpush1.xpose.msra.mxu0 0.0
        %1061 = vmatprep.subr.mxu0 0.0
        %1062 = vmatpush1.xpose.msra.mxu0 0.0
        %1063 = vmatprep.subr.mxu0 0.0
        %1064 = vmatpush1.xpose.msra.mxu0 0.0
        %1065 = vmatprep.subr.mxu0 0.0
        %1066 = vmatpush1.xpose.msra.mxu0 0.0
        %1067 = vmatprep.subr.mxu0 0.0
        %1068 = vmatpush1.xpose.msra.mxu0 %v1035
        %1069 = vmatprep.subr.mxu0 0.0
        %1070 = vmatpush2.xpose.msra.mxu0 0.0
        %1071 = vmatprep.subr.mxu0 0.0
        %1072 = vmatpush2.xpose.msra.mxu0 0.0
        %1073 = vmatprep.subr.mxu0 0.0
        %1074 = vmatpush2.xpose.msra.mxu0 0.0
        %1075 = vmatprep.subr.mxu0 0.0
        %1076 = vmatpush2.xpose.msra.mxu0 0.0
        %1077 = vmatprep.subr.mxu0 0.0
        %1078 = vmatpush2.xpose.msra.mxu0 0.0
        %1079 = vmatprep.subr.mxu0 0.0
        %1080 = vmatpush2.xpose.msra.mxu0 0.0
        %1081 = vmatprep.subr.mxu0 0.0
        %1082 = vmatpush2.xpose.msra.mxu0 0.0
        %1083 = vmatprep.subr.mxu0 0.0
        %1084 = vmatpush2.xpose.msra.mxu0 0.0
        %1085 = vmatprep.subr.mxu0 0.0
        %1086 = vmatpush2.xpose.msra.mxu0 0.0
        %1087 = vmatprep.subr.mxu0 0.0
        %1088 = vmatpush2.xpose.msra.mxu0 0.0
        %1089 = vmatprep.subr.mxu0 0.0
        %1090 = vmatpush2.xpose.msra.mxu0 0.0
        %1091 = vmatprep.subr.mxu0 0.0
        %1092 = vmatpush2.xpose.msra.mxu0 0.0
        %1093 = vmatprep.subr.mxu0 0.0
        %1094 = vmatpush2.xpose.msra.mxu0 0.0
        %1095 = vmatprep.subr.mxu0 0.0
        %1096 = vmatpush2.xpose.msra.mxu0 0.0
        %1097 = vmatprep.subr.mxu0 0.0
        %1098 = vmatpush2.xpose.msra.mxu0 0.0
        %1099 = vmatprep.subr.mxu0 0.0
        %1100 = vmatpush2.xpose.msra.mxu0 0.0
        %1101 = vmatprep.mubr.f32.mxu0 0.0
        %1102 = vmatmul.mubr.f32.gmra.mxu0 %v1033
        %v1103 = vpop.f32.mrf.mxu0
        %v1104 = vadd.f32 0.0, %v1103
        %v1105 = vpop.f32.mrf.mxu0
        %1106 = vdwg.mxu0
        %v1107 = vsel %vm316, %v1104, -inf
        %1108 = vmax.xlane.f32.xlu0 %v1107
        %v1109 = vpop.xlane.xlu0 %1108
        %v1110 = vsub.f32 %v1104, %v1109
        %v1111 = vmul.f32 %v1110, 1.442695
        %v1112 = vpow.pop %v1111
        %v1113 = vsel %vm316, %v1112, 0.0
        %1114 = vadd.xlane.f32.xlu0 %v1113
        %v1115 = vpop.xlane.xlu0 %1114
        %v1116 = vrcp.pop %v1115
        %v1117 = vmul.f32 %v1112, %v1116
        %1118 = vrot.lane.b32.xlu0 %v309, 40
        %v1119 = vpop.permute.xlu0 %1118
        %v1122 = vsel %vm316, %v1117, 0
        %1124 = vmatprep.subr.mxu0 0.0
        %1125 = vmatpush1.msra.mxu0 0.0
        %1126 = vmatprep.subr.mxu0 0.0
        %1127 = vmatpush1.msra.mxu0 0.0
        %1128 = vmatprep.subr.mxu0 0.0
        %1129 = vmatpush1.msra.mxu0 0.0
        %1130 = vmatprep.subr.mxu0 0.0
        %1131 = vmatpush1.msra.mxu0 0.0
        %1132 = vmatprep.subr.mxu0 0.0
        %1133 = vmatpush1.msra.mxu0 0.0
        %1134 = vmatprep.subr.mxu0 0.0
        %1135 = vmatpush1.msra.mxu0 0.0
        %1136 = vmatprep.subr.mxu0 0.0
        %1137 = vmatpush1.msra.mxu0 0.0
        %1138 = vmatprep.subr.mxu0 0.0
        %1139 = vmatpush1.msra.mxu0 0.0
        %1140 = vmatprep.subr.mxu0 0.0
        %1141 = vmatpush1.msra.mxu0 0.0
        %1142 = vmatprep.subr.mxu0 0.0
        %1143 = vmatpush1.msra.mxu0 0.0
        %1144 = vmatprep.subr.mxu0 0.0
        %1145 = vmatpush1.msra.mxu0 0.0
        %1146 = vmatprep.subr.mxu0 0.0
        %1147 = vmatpush1.msra.mxu0 0.0
        %1148 = vmatprep.subr.mxu0 0.0
        %1149 = vmatpush1.msra.mxu0 0.0
        %1150 = vmatprep.subr.mxu0 0.0
        %1151 = vmatpush1.msra.mxu0 0.0
        %1152 = vmatprep.subr.mxu0 0.0
        %1153 = vmatpush1.msra.mxu0 0.0
        %1154 = vmatprep.subr.mxu0 0.0
        %1155 = vmatpush1.msra.mxu0 %v1119
        %1156 = vmatprep.subr.mxu0 0.0
        %1157 = vmatpush2.msra.mxu0 0.0
        %1158 = vmatprep.subr.mxu0 0.0
        %1159 = vmatpush2.msra.mxu0 0.0
        %1160 = vmatprep.subr.mxu0 0.0
        %1161 = vmatpush2.msra.mxu0 0.0
        %1162 = vmatprep.subr.mxu0 0.0
        %1163 = vmatpush2.msra.mxu0 0.0
        %1164 = vmatprep.subr.mxu0 0.0
        %1165 = vmatpush2.msra.mxu0 0.0
        %1166 = vmatprep.subr.mxu0 0.0
        %1167 = vmatpush2.msra.mxu0 0.0
        %1168 = vmatprep.subr.mxu0 0.0
        %1169 = vmatpush2.msra.mxu0 0.0
        %1170 = vmatprep.subr.mxu0 0.0
        %1171 = vmatpush2.msra.mxu0 0.0
        %1172 = vmatprep.subr.mxu0 0.0
        %1173 = vmatpush2.msra.mxu0 0.0
        %1174 = vmatprep.subr.mxu0 0.0
        %1175 = vmatpush2.msra.mxu0 0.0
        %1176 = vmatprep.subr.mxu0 0.0
        %1177 = vmatpush2.msra.mxu0 0.0
        %1178 = vmatprep.subr.mxu0 0.0
        %1179 = vmatpush2.msra.mxu0 0.0
        %1180 = vmatprep.subr.mxu0 0.0
        %1181 = vmatpush2.msra.mxu0 0.0
        %1182 = vmatprep.subr.mxu0 0.0
        %1183 = vmatpush2.msra.mxu0 0.0
        %1184 = vmatprep.subr.mxu0 0.0
        %1185 = vmatpush2.msra.mxu0 0.0
        %1186 = vmatprep.subr.mxu0 0.0
        %1187 = vmatpush2.msra.mxu0 0.0
        %1188 = vmatprep.mubr.f32.mxu0 0.0
        %1189 = vmatmul.mubr.f32.gmra.mxu0 %v1122
        %v1190 = vpop.f32.mrf.mxu0
        %v1191 = vadd.f32 0.0, %v1190
        %v1192 = vpop.f32.mrf.mxu0
        %1193 = vdwg.mxu0
        %v1195 = vsel %vm316, %v1191, 0
        %1197 = vmatprep.subr.mxu0 0.0
        %1198 = vmatpush1.msra.mxu0 0.0
        %1199 = vmatprep.subr.mxu0 0.0
        %1200 = vmatpush1.msra.mxu0 0.0
        %1201 = vmatprep.subr.mxu0 0.0
        %1202 = vmatpush1.msra.mxu0 0.0
        %1203 = vmatprep.subr.mxu0 0.0
        %1204 = vmatpush1.msra.mxu0 0.0
        %1205 = vmatprep.subr.mxu0 0.0
        %1206 = vmatpush1.msra.mxu0 0.0
        %1207 = vmatprep.subr.mxu0 0.0
        %1208 = vmatpush1.msra.mxu0 0.0
        %1209 = vmatprep.subr.mxu0 0.0
        %1210 = vmatpush1.msra.mxu0 0.0
        %1211 = vmatprep.subr.mxu0 0.0
        %1212 = vmatpush1.msra.mxu0 0.0
        %1213 = vmatprep.subr.mxu0 0.0
        %1214 = vmatpush1.msra.mxu0 0.0
        %1215 = vmatprep.subr.mxu0 0.0
        %1216 = vmatpush1.msra.mxu0 0.0
        %1217 = vmatprep.subr.mxu0 0.0
        %1218 = vmatpush1.msra.mxu0 0.0
        %1219 = vmatprep.subr.mxu0 0.0
        %1220 = vmatpush1.msra.mxu0 0.0
        %1221 = vmatprep.subr.mxu0 0.0
        %1222 = vmatpush1.msra.mxu0 0.0
        %1223 = vmatprep.subr.mxu0 0.0
        %1224 = vmatpush1.msra.mxu0 0.0
        %1225 = vmatprep.subr.mxu0 0.0
        %1226 = vmatpush1.msra.mxu0 0.0
        %1227 = vmatprep.subr.mxu0 0.0
        %1228 = vmatpush1.msra.mxu0 %v222
        %1229 = vmatprep.subr.mxu0 0.0
        %1230 = vmatpush2.msra.mxu0 0.0
        %1231 = vmatprep.subr.mxu0 0.0
        %1232 = vmatpush2.msra.mxu0 0.0
        %1233 = vmatprep.subr.mxu0 0.0
        %1234 = vmatpush2.msra.mxu0 0.0
        %1235 = vmatprep.subr.mxu0 0.0
        %1236 = vmatpush2.msra.mxu0 0.0
        %1237 = vmatprep.subr.mxu0 0.0
        %1238 = vmatpush2.msra.mxu0 0.0
        %1239 = vmatprep.subr.mxu0 0.0
        %1240 = vmatpush2.msra.mxu0 0.0
        %1241 = vmatprep.subr.mxu0 0.0
        %1242 = vmatpush2.msra.mxu0 0.0
        %1243 = vmatprep.subr.mxu0 0.0
        %1244 = vmatpush2.msra.mxu0 0.0
        %1245 = vmatprep.subr.mxu0 0.0
        %1246 = vmatpush2.msra.mxu0 0.0
        %1247 = vmatprep.subr.mxu0 0.0
        %1248 = vmatpush2.msra.mxu0 0.0
        %1249 = vmatprep.subr.mxu0 0.0
        %1250 = vmatpush2.msra.mxu0 0.0
        %1251 = vmatprep.subr.mxu0 0.0
        %1252 = vmatpush2.msra.mxu0 0.0
        %1253 = vmatprep.subr.mxu0 0.0
        %1254 = vmatpush2.msra.mxu0 0.0
        %1255 = vmatprep.subr.mxu0 0.0
        %1256 = vmatpush2.msra.mxu0 0.0
        %1257 = vmatprep.subr.mxu0 0.0
        %1258 = vmatpush2.msra.mxu0 0.0
        %1259 = vmatprep.subr.mxu0 0.0
        %1260 = vmatpush2.msra.mxu0 0.0
        %1261 = vmatprep.mubr.f32.mxu0 0.0
        %1262 = vmatmul.mubr.f32.gmra.mxu0 %v1195
        %v1263 = vpop.f32.mrf.mxu0
        %v1264 = vadd.f32 0.0, %v1263
        %v1265 = vpop.f32.mrf.mxu0
        %1266 = vdwg.mxu0
        %v1267 = vadd.f32 %v1028, %v1264
        %v1268 = vlaneseq
        %v1269 = vshrl.u32 %v1268, 7
        %v1270 = vsub.s32 1, %v1269
        %v1271 = vrot.slane %v233, %v1270
        %v1272 = vadd.f32 %v1267, %v1271
        %v1273 = vadd.f32 %v213, %v1272
        %v1274 = vsel %vm238, %v1273, 0.0
        %1275 = vadd.xlane.f32.xlu0 %v1274
        %v1276 = vpop.xlane.xlu0 %1275
        %v1277 = vrcp.pop 32.0
        %v1278 = vmul.f32 %v1276, %v1277
        %v1279 = vsub.f32 %v1273, %v1278
        %v1280 = vmul.f32 %v1279, %v1279
        %v1281 = vsel %vm238, %v1280, 0.0
        %1282 = vadd.xlane.f32.xlu0 %v1281
        %v1283 = vpop.xlane.xlu0 %1282
        %v1284 = vmul.f32 %v1283, %v1277
        %v1285 = vadd.f32 %v1284, 1e-05
        %v1286 = vrsqrt.pop %v1285
        %v1287 = vmul.f32 %v1279, %v1286
        %v1288 = vlaneseq
        %v1289 = vshrl.u32 %v1288, 7
        %v1290 = vsub.s32 4, %v1289
        %v1291 = vrot.slane %v233, %v1290
        %v1292 = vmul.f32 %v1287, %v1291
        %v1293 = vlaneseq
        %v1294 = vshrl.u32 %v1293, 7
        %v1295 = vsub.s32 5, %v1294
        %v1296 = vrot.slane %v233, %v1295
        %v1297 = vadd.f32 %v1292, %v1296
        %v1298 = vlaneseq
        %v1299 = vshrl.u32 %v1298, 7
        %v1300 = vsub.s32 2, %v1299
        %v1301 = vrot.slane %v233, %v1300
        %v1303 = vsel %vm238, %v1297, 0
        %1305 = vmatprep.subr.mxu0 0.0
        %1306 = vmatpush1.msra.mxu0 0.0
        %1307 = vmatprep.subr.mxu0 0.0
        %1308 = vmatpush1.msra.mxu0 0.0
        %1309 = vmatprep.subr.mxu0 0.0
        %1310 = vmatpush1.msra.mxu0 0.0
        %1311 = vmatprep.subr.mxu0 0.0
        %1312 = vmatpush1.msra.mxu0 0.0
        %1313 = vmatprep.subr.mxu0 0.0
        %1314 = vmatpush1.msra.mxu0 0.0
        %1315 = vmatprep.subr.mxu0 0.0
        %1316 = vmatpush1.msra.mxu0 0.0
        %1317 = vmatprep.subr.mxu0 0.0
        %1318 = vmatpush1.msra.mxu0 0.0
        %1319 = vmatprep.subr.mxu0 0.0
        %1320 = vmatpush1.msra.mxu0 0.0
        %1321 = vmatprep.subr.mxu0 0.0
        %1322 = vmatpush1.msra.mxu0 0.0
        %1323 = vmatprep.subr.mxu0 0.0
        %1324 = vmatpush1.msra.mxu0 0.0
        %1325 = vmatprep.subr.mxu0 0.0
        %1326 = vmatpush1.msra.mxu0 0.0
        %1327 = vmatprep.subr.mxu0 0.0
        %1328 = vmatpush1.msra.mxu0 0.0
        %1329 = vmatprep.subr.mxu0 0.0
        %1330 = vmatpush1.msra.mxu0 %v227
        %1331 = vmatprep.subr.mxu0 0.0
        %1332 = vmatpush1.msra.mxu0 %v226
        %1333 = vmatprep.subr.mxu0 0.0
        %1334 = vmatpush1.msra.mxu0 %v225
        %1335 = vmatprep.subr.mxu0 0.0
        %1336 = vmatpush1.msra.mxu0 %v224
        %1337 = vmatprep.subr.mxu0 0.0
        %1338 = vmatpush2.msra.mxu0 0.0
        %1339 = vmatprep.subr.mxu0 0.0
        %1340 = vmatpush2.msra.mxu0 0.0
        %1341 = vmatprep.subr.mxu0 0.0
        %1342 = vmatpush2.msra.mxu0 0.0
        %1343 = vmatprep.subr.mxu0 0.0
        %1344 = vmatpush2.msra.mxu0 0.0
        %1345 = vmatprep.subr.mxu0 0.0
        %1346 = vmatpush2.msra.mxu0 0.0
        %1347 = vmatprep.subr.mxu0 0.0
        %1348 = vmatpush2.msra.mxu0 0.0
        %1349 = vmatprep.subr.mxu0 0.0
        %1350 = vmatpush2.msra.mxu0 0.0
        %1351 = vmatprep.subr.mxu0 0.0
        %1352 = vmatpush2.msra.mxu0 0.0
        %1353 = vmatprep.subr.mxu0 0.0
        %1354 = vmatpush2.msra.mxu0 0.0
        %1355 = vmatprep.subr.mxu0 0.0
        %1356 = vmatpush2.msra.mxu0 0.0
        %1357 = vmatprep.subr.mxu0 0.0
        %1358 = vmatpush2.msra.mxu0 0.0
        %1359 = vmatprep.subr.mxu0 0.0
        %1360 = vmatpush2.msra.mxu0 0.0
        %1361 = vmatprep.subr.mxu0 0.0
        %1362 = vmatpush2.msra.mxu0 0.0
        %1363 = vmatprep.subr.mxu0 0.0
        %1364 = vmatpush2.msra.mxu0 0.0
        %1365 = vmatprep.subr.mxu0 0.0
        %1366 = vmatpush2.msra.mxu0 0.0
        %1367 = vmatprep.subr.mxu0 0.0
        %1368 = vmatpush2.msra.mxu0 0.0
        %1369 = vmatprep.mubr.f32.mxu0 0.0
        %1370 = vmatmul.mubr.f32.gmra.mxu0 %v1303
        %v1371 = vpop.f32.mrf.mxu0
        %v1372 = vadd.f32 %v1301, %v1371
        %v1373 = vpop.f32.mrf.mxu0
        %1374 = vdwg.mxu0
        %v1375 = vmax.f32 %v1372, 0.0
        %v1376 = vlaneseq
        %v1377 = vshrl.u32 %v1376, 7
        %v1378 = vsub.s32 3, %v1377
        %v1379 = vrot.slane %v233, %v1378
        %vm1380 = vcmask 523264
        %v1382 = vsel %vm1380, %v1375, 0
        %v1385 = vsel %vm1380, %v229, 0
        %v1388 = vsel %vm1380, %v230, 0
        %v1391 = vsel %vm1380, %v231, 0
        %v1394 = vsel %vm1380, %v232, 0
        %1396 = vmatprep.subr.mxu0 0.0
        %1397 = vmatpush1.xpose.msra.mxu0 0.0
        %1398 = vmatprep.subr.mxu0 0.0
        %1399 = vmatpush1.xpose.msra.mxu0 0.0
        %1400 = vmatprep.subr.mxu0 0.0
        %1401 = vmatpush1.xpose.msra.mxu0 0.0
        %1402 = vmatprep.subr.mxu0 0.0
        %1403 = vmatpush1.xpose.msra.mxu0 0.0
        %1404 = vmatprep.subr.mxu0 0.0
        %1405 = vmatpush1.xpose.msra.mxu0 0.0
        %1406 = vmatprep.subr.mxu0 0.0
        %1407 = vmatpush1.xpose.msra.mxu0 0.0
        %1408 = vmatprep.subr.mxu0 0.0
        %1409 = vmatpush1.xpose.msra.mxu0 0.0
        %1410 = vmatprep.subr.mxu0 0.0
        %1411 = vmatpush1.xpose.msra.mxu0 0.0
        %1412 = vmatprep.subr.mxu0 0.0
        %1413 = vmatpush1.xpose.msra.mxu0 0.0
        %1414 = vmatprep.subr.mxu0 0.0
        %1415 = vmatpush1.xpose.msra.mxu0 0.0
        %1416 = vmatprep.subr.mxu0 0.0
        %1417 = vmatpush1.xpose.msra.mxu0 0.0
        %1418 = vmatprep.subr.mxu0 0.0
        %1419 = vmatpush1.xpose.msra.mxu0 0.0
        %1420 = vmatprep.subr.mxu0 0.0
        %1421 = vmatpush1.xpose.msra.mxu0 %v1394
        %1422 = vmatprep.subr.mxu0 0.0
        %1423 = vmatpush1.xpose.msra.mxu0 %v1391
        %1424 = vmatprep.subr.mxu0 0.0
        %1425 = vmatpush1.xpose.msra.mxu0 %v1388
        %1426 = vmatprep.subr.mxu0 0.0
        %1427 = vmatpush1.xpose.msra.mxu0 %v1385
        %1428 = vmatprep.subr.mxu0 0.0
        %1429 = vmatpush2.xpose.msra.mxu0 0.0
        %1430 = vmatprep.subr.mxu0 0.0
        %1431 = vmatpush2.xpose.msra.mxu0 0.0
        %1432 = vmatprep.subr.mxu0 0.0
        %1433 = vmatpush2.xpose.msra.mxu0 0.0
        %1434 = vmatprep.subr.mxu0 0.0
        %1435 = vmatpush2.xpose.msra.mxu0 0.0
        %1436 = vmatprep.subr.mxu0 0.0
        %1437 = vmatpush2.xpose.msra.mxu0 0.0
        %1438 = vmatprep.subr.mxu0 0.0
        %1439 = vmatpush2.xpose.msra.mxu0 0.0
        %1440 = vmatprep.subr.mxu0 0.0
        %1441 = vmatpush2.xpose.msra.mxu0 0.0
        %1442 = vmatprep.subr.mxu0 0.0
        %1443 = vmatpush2.xpose.msra.mxu0 0.0
        %1444 = vmatprep.subr.mxu0 0.0
        %1445 = vmatpush2.xpose.msra.mxu0 0.0
        %1446 = vmatprep.subr.mxu0 0.0
        %1447 = vmatpush2.xpose.msra.mxu0 0.0
        %1448 = vmatprep.subr.mxu0 0.0
        %1449 = vmatpush2.xpose.msra.mxu0 0.0
        %1450 = vmatprep.subr.mxu0 0.0
        %1451 = vmatpush2.xpose.msra.mxu0 0.0
        %1452 = vmatprep.subr.mxu0 0.0
        %1453 = vmatpush2.xpose.msra.mxu0 0.0
        %1454 = vmatprep.subr.mxu0 0.0
        %1455 = vmatpush2.xpose.msra.mxu0 0.0
        %1456 = vmatprep.subr.mxu0 0.0
        %1457 = vmatpush2.xpose.msra.mxu0 0.0
        %1458 = vmatprep.subr.mxu0 0.0
        %1459 = vmatpush2.xpose.msra.mxu0 0.0
        %1460 = vmatprep.mubr.f32.mxu0 0.0
        %1461 = vmatmul.mubr.f32.gmra.mxu0 %v1382
        %v1462 = vpop.f32.mrf.mxu0
        %v1463 = vadd.f32 %v1379, %v1462
        %v1464 = vpop.f32.mrf.mxu0
        %1465 = vdwg.mxu0
        %v1466 = vadd.f32 %v1297, %v1463
        %v1467 = vsel %vm238, %v1466, 0.0
        %1468 = vadd.xlane.f32.xlu0 %v1467
        %v1469 = vpop.xlane.xlu0 %1468
        %v1470 = vmul.f32 %v1469, %v1277
        %v1471 = vsub.f32 %v1466, %v1470
        %v1472 = vmul.f32 %v1471, %v1471
        %v1473 = vsel %vm238, %v1472, 0.0
        %1474 = vadd.xlane.f32.xlu0 %v1473
        %v1475 = vpop.xlane.xlu0 %1474
        %v1476 = vmul.f32 %v1475, %v1277
        %v1477 = vadd.f32 %v1476, 1e-05
        %v1478 = vrsqrt.pop %v1477
        %v1479 = vmul.f32 %v1471, %v1478
        %v1480 = vlaneseq
        %v1481 = vshrl.u32 %v1480, 7
        %v1482 = vsub.s32 6, %v1481
        %v1483 = vrot.slane %v233, %v1482
        %v1484 = vmul.f32 %v1479, %v1483
        %v1485 = vlaneseq
        %v1486 = vshrl.u32 %v1485, 7
        %v1487 = vsub.s32 7, %v1486
        %v1488 = vrot.slane %v233, %v1487
        %v1489 = vadd.f32 %v1484, %v1488
        %1490 = vst.msk [vmem:[%s212] sm:$0xff] %vm238, %v1489
        %s1491 = sand.u32 %s97, 1
        %s1492 = scalar_lea.sflag [#allocation4], %s1491
        %s1493 = sand.u32 %s97, 1
        %s1494 = smul.addr %s1493, 8
        %s1495 = scalar_lea.vmem [#allocation8], %s1494
        // Predicated region
        $region45: #{tpu_custom_call.1} parent=31 // pred_check
          %p1496 = pneg %p107
        $region46: #{tpu_custom_call.1} parent=31 // pred_check_branch
          %1498 = sbr.rel (%p1496) target = $region48
        $region47: #{tpu_custom_call.1} parent=31 // pred_region
          %s1500 = ssub.s32 128, 128
          %1501 = vsyncadd %s1492, %s1500
          %s1502 = smul.addr %s21, 128
          %s1503 = scalar_lea.hbm %s3, %s1502
          %s1505 = sshll.u32 %s1495, 4
          %s1506 = int_to_ptr.vmem [resolvable:$true] %s1505
          %1508 = dma.vmem_to_hbm [thread:$0]  %s1506, 128, %s1503, %s1492
        $region48: #{tpu_custom_call.1} parent=31 // pred_fallthru
          _
      $region32: #{tpu_custom_call.1} parent=5 // pred_fallthru
        _
      %p1509 = scmp.le.s32.totalorder 2, %s16
      // Predicated region
      $region49: #{tpu_custom_call.1} parent=5 // pred_check
        %p1510 = pneg %p1509
      $region50: #{tpu_custom_call.1} parent=5 // pred_check_branch
        %1512 = sbr.rel (%p1510) target = $region52
      $region51: #{tpu_custom_call.1} parent=5 // pred_region
        %s1513 = ssub.s32 %s16, 2
        // Predicated region
        $region53: #{tpu_custom_call.1} parent=51 // pred_check
          %p1514 = pneg %p113
        $region54: #{tpu_custom_call.1} parent=51 // pred_check_branch
          %1516 = sbr.rel (%p1514) target = $region56
        $region55: #{tpu_custom_call.1} parent=51 // pred_region
          %s1517 = sand.u32 %s98, 1
          %s1518 = scalar_lea.sflag [#allocation4], %s1517
          %s1519 = sand.u32 %s98, 1
          %s1520 = smul.addr %s1519, 8
          %s1521 = scalar_lea.vmem [#allocation8], %s1520
          %1522 = dma.done %s1518, 128
        $region56: #{tpu_custom_call.1} parent=51 // pred_fallthru
          _
      $region52: #{tpu_custom_call.1} parent=5 // pred_fallthru
        _
    $region6: #{tpu_custom_call.1} parent=1 // loop_footer
      %s20 = sadd.s32 1, %s16
    $region7: #{tpu_custom_call.1} parent=1 // loop_footer_branch
      %15 = sbr.rel target = $region3
    $region8: #{tpu_custom_call.1} parent=1 // loop_exit
      _
    %1523 = vsyncpa [#allocation3], 1
    %s1524 = scalar_lea.sflag [#allocation3], 1
    %1525 = vsyncpa %s1524, 1
    %1526 = vsyncpa [#allocation6], 1
    %1527 = vsyncpa [#allocation4], 1
    %s1528 = scalar_lea.sflag [#allocation4], 1
    %1529 = vsyncpa %s1528, 1

</llo_original>
